<compile_context>
chip_gen: v5e
topology: v5e:2x2
jax: 0.10.0
libtpu: 0.0.40
codegen_flags: <defaults>
</compile_context>

<pallas_src>
import functools
import math

import jax
import jax.numpy as jnp
from jax.experimental import pallas as pl
from jax.experimental.pallas import tpu as pltpu

# (in_features, out_features, sigmoid-follows) for the 6 Linear layers.
_LAYERS = [
    (256, 300, True),   # encoder
    (300, 100, True),
    (100, 20, True),
    (20, 100, True),    # decoder
    (100, 300, True),
    (300, 256, False),  # final layer: no activation
]

_LANE = 128
_BATCH_ALIGN = 16      # valid sublane multiple for both f32 (8) and bf16 (16) tiles


def _round_up(n, m):
    return (n + m - 1) // m * m


# Lane-aligned (padded) layer dims used inside the kernel.
_PADDED = [(_round_up(fin, _LANE), _round_up(fout, _LANE), act)
           for (fin, fout, act) in _LAYERS]
_WEIGHT_BYTES = sum(fp * op * 2 for (fp, op, _) in _PADDED)  # bf16 resident weights


def _tpu_has_bf16_vpu():
    """v6e/v7x have bf16 VALU/EUP; v5e and older don't (keep f32 epilogue there)."""
    try:
        kind = jax.devices()[0].device_kind.lower()
    except Exception:
        return True
    return not any(tag in kind for tag in ("v2", "v3", "v4", "v5"))


def ae_sigm_kernel(x_ref, w1_ref, w2_ref, w3_ref, w4_ref, w5_ref, w6_ref, o_ref,
                   *, act_dtype):
    # bf16 operands into the MXU, f32 accumulation.
    h = x_ref[...].astype(jnp.bfloat16)
    w_refs = (w1_ref, w2_ref, w3_ref, w4_ref, w5_ref, w6_ref)
    for (_fin_p, _fout_p, act), w_ref in zip(_PADDED, w_refs):
        acc = jnp.dot(h, w_ref[...], preferred_element_type=jnp.float32)
        if act:
            # Activated-layer weights were pre-scaled by 0.5 at prepare time, so
            # sigmoid(z) = 0.5*tanh(0.5*z) + 0.5 = 0.5*tanh(acc) + 0.5.
            # Single EUP transcendental; epilogue math in bf16 on v6e/v7x.
            a = acc.astype(act_dtype)
            h = (jnp.tanh(a) * 0.5 + 0.5).astype(jnp.bfloat16)
        else:
            h = acc
    o_ref[...] = h.astype(o_ref.dtype)


def prepare_weights(weights):
    """Pad logical [fin, fout] weights to lane-aligned bf16, folding the sigmoid's
    inner 0.5 into activated layers' weights.

    Zero padding is inert: padded output columns become 0.5*tanh(0)+0.5 = 0.5 but
    multiply zero-padded input rows of the following weight, contributing 0.
    """
    prepared = []
    for (fin, fout, act), (fin_p, fout_p, _), w in zip(_LAYERS, _PADDED, weights):
        assert w.shape == (fin, fout)
        w32 = w.astype(jnp.float32)
        if act:
            w32 = w32 * 0.5   # fold sigmoid's inner scale: one fewer VPU mul/element
        wp = jnp.zeros((fin_p, fout_p), dtype=jnp.bfloat16)
        wp = wp.at[:fin, :fout].set(w32.astype(jnp.bfloat16))
        prepared.append(wp)
    return prepared


def _choose_block_b(B, block_b):
    if block_b is None:
        block_b = 4096 if B >= 8192 else 2048
    block_b = _round_up(max(block_b, _BATCH_ALIGN), _BATCH_ALIGN)
    # Megacore: v7x has 2 TensorCores; keep >= 2 grid steps whenever B allows it.
    if B > 2 * _BATCH_ALIGN:
        block_b = min(block_b, _round_up(pl.cdiv(B, 2), _BATCH_ALIGN))
    block_b = min(block_b, _round_up(B, _BATCH_ALIGN))
    return block_b


def ae_sigm_forward(x, weights, *, block_b=None, out_dtype=None):
    """x: [B, 256]; weights: list of 6 arrays with shape [in, out] (pre-transposed)."""
    B, D_in = x.shape
    assert D_in == 256
    out_dtype = x.dtype if out_dtype is None else jnp.dtype(out_dtype)
    weights_p = prepare_weights(weights)

    block_b = _choose_block_b(B, block_b)
    B_pad = _round_up(B, block_b)
    if B_pad != B:
        x = jnp.pad(x, ((0, B_pad - B), (0, 0)))
    grid = (B_pad // block_b,)

    # Input / output tiled along batch; weights fully resident
    # (constant block index -> no per-step re-DMA).
    in_specs = [pl.BlockSpec((block_b, 256), lambda i: (i, 0))]
    for (fin_p, fout_p, _) in _PADDED:
        in_specs.append(pl.BlockSpec((fin_p, fout_p), lambda i: (0, 0)))
    out_spec = pl.BlockSpec((block_b, 256), lambda i: (i, 0))

    # Explicit VMEM budget: double-buffered x/out tiles + weights (2 bufs reserved
    # by the pipeline) + f32/bf16 intermediates, with margin. Keeps large tiles
    # compiling on v7x (32 MiB scoped default / 64 MiB physical).
    io_bytes = block_b * 256 * (x.dtype.itemsize + out_dtype.itemsize)
    interm_bytes = block_b * 384 * (4 + 4 + 2)
    vmem_budget = 2 * io_bytes + 2 * _WEIGHT_BYTES + interm_bytes
    vmem_limit = int(min(max(24 << 20, int(vmem_budget * 1.5) + (4 << 20)), 48 << 20))

    # Cost estimate over the padded shapes the kernel actually executes.
    flops = 2 * sum(fp * op for (fp, op, _) in _PADDED) * B_pad
    transc = sum(op for (_, op, act) in _PADDED if act) * B_pad
    cost = pl.CostEstimate(
        flops=flops,
        transcendentals=transc,
        bytes_accessed=B_pad * 256 * (x.dtype.itemsize + out_dtype.itemsize)
        + _WEIGHT_BYTES,
    )

    act_dtype = jnp.bfloat16 if _tpu_has_bf16_vpu() else jnp.float32
    kernel = functools.partial(ae_sigm_kernel, act_dtype=act_dtype)

    out = pl.pallas_call(
        kernel,
        out_shape=jax.ShapeDtypeStruct((B_pad, 256), out_dtype),
        grid_spec=pltpu.PrefetchScalarGridSpec(
            num_scalar_prefetch=0,
            grid=grid,
            in_specs=in_specs,
            out_specs=out_spec,
        ),
        compiler_params=pltpu.CompilerParams(
            dimension_semantics=("parallel",),
            vmem_limit_bytes=vmem_limit,
        ),
        cost_estimate=cost,
    )(x, *weights_p)
    return out[:B]


def init_weights(key):
    """Deterministic init matching nn.init.uniform_(-1/sqrt(fin), 1/sqrt(fin)).

    Stored as [in_features, out_features] (transposed vs PyTorch nn.Linear.weight).
    """
    weights = []
    for (fin, fout, _) in _LAYERS:
        key, sub = jax.random.split(key)
        bound = 1.0 / math.sqrt(fin)
        w = jax.random.uniform(sub, (fin, fout), dtype=jnp.float32,
                               minval=-bound, maxval=bound)
        weights.append(w)
    return weights


def ae_sigm_reference(x, weights):
    """Pure-JAX float32 reference (uses the original, unscaled weights)."""
    h = x.astype(jnp.float32)
    for (_fin, _fout, act), w in zip(_LAYERS, weights):
        h = h @ w
        if act:
            h = jax.nn.sigmoid(h)
    return h


if __name__ == "__main__":
    key = jax.random.PRNGKey(0)
    k_w, k_x = jax.random.split(key)

    weights = init_weights(k_w)

    # Small batch (single grid step; batch padded up to the 16-row alignment).
    B = 8
    x = jax.random.normal(k_x, (B, 256), dtype=jnp.float32)
    out = jax.block_until_ready(ae_sigm_forward(x, weights))
    ref = ae_sigm_reference(x, weights)
    assert out.shape == (B, 256) and out.dtype == x.dtype
    # bf16 weights/activations in the kernel vs f32 reference -> loose tolerance.
    assert jnp.allclose(out, ref.astype(out.dtype), atol=4e-2, rtol=4e-2), \
        "mismatch vs reference (B=8)"

    # Multi-step grid (>= 2 steps, exercises megacore path) + batch padding.
    B2 = 528
    x2 = jax.random.normal(jax.random.fold_in(k_x, 1), (B2, 256), dtype=jnp.float32)
    out2 = jax.block_until_ready(ae_sigm_forward(x2, weights))
    ref2 = ae_sigm_reference(x2, weights)
    assert out2.shape == (B2, 256)
    assert jnp.allclose(out2, ref2.astype(out2.dtype), atol=4e-2, rtol=4e-2), \
        "mismatch vs reference (B=528)"

    # bf16 I/O path (halves HBM traffic on v6e; no wrapper-side astype added —
    # the interface dtype itself is bf16).
    x3 = x2.astype(jnp.bfloat16)
    out3 = jax.block_until_ready(ae_sigm_forward(x3, weights))
    assert out3.shape == (B2, 256) and out3.dtype == jnp.bfloat16
    assert jnp.allclose(out3.astype(jnp.float32), ref2, atol=6e-2, rtol=6e-2), \
        "mismatch vs reference (bf16 I/O)"

    print("KERNEL_OK")
</pallas_src>

<mosaic_0001>
module attributes {stable_mosaic.version = 11 : i64} {
  func.func @ae_sigm_kernel(%arg0: i32, %arg1: memref<16x256xf32, #tpu.memory_space<vmem>>, %arg2: memref<256x384xbf16, #tpu.memory_space<vmem>>, %arg3: memref<384x128xbf16, #tpu.memory_space<vmem>>, %arg4: memref<128x128xbf16, #tpu.memory_space<vmem>>, %arg5: memref<128x128xbf16, #tpu.memory_space<vmem>>, %arg6: memref<128x384xbf16, #tpu.memory_space<vmem>>, %arg7: memref<384x256xbf16, #tpu.memory_space<vmem>>, %arg8: memref<16x256xf32, #tpu.memory_space<vmem>>) attributes {dimension_semantics = [#tpu.dimension_semantics<parallel>], iteration_bounds = array<i64: 1>, scalar_prefetch = 0 : i64, scratch_operands = 0 : i64, tpu.core_type = #tpu.core_type<tc>, window_params = [{transform_indices = @transform_0, window_bounds = array<i64: 16, 256>}, {pipeline_mode = #tpu.pipeline_mode<synchronous>, transform_indices = @transform_1, window_bounds = array<i64: 256, 384>}, {pipeline_mode = #tpu.pipeline_mode<synchronous>, transform_indices = @transform_2, window_bounds = array<i64: 384, 128>}, {pipeline_mode = #tpu.pipeline_mode<synchronous>, transform_indices = @transform_3, window_bounds = array<i64: 128, 128>}, {pipeline_mode = #tpu.pipeline_mode<synchronous>, transform_indices = @transform_4, window_bounds = array<i64: 128, 128>}, {pipeline_mode = #tpu.pipeline_mode<synchronous>, transform_indices = @transform_5, window_bounds = array<i64: 128, 384>}, {pipeline_mode = #tpu.pipeline_mode<synchronous>, transform_indices = @transform_6, window_bounds = array<i64: 384, 256>}, {transform_indices = @transform_7, window_bounds = array<i64: 16, 256>}]} {
    %c0 = arith.constant 0 : index
    %c0_0 = arith.constant 0 : index
    %0 = vector.load %arg1[%c0, %c0_0] : memref<16x256xf32, #tpu.memory_space<vmem>>, vector<16x256xf32>
    %1 = arith.truncf %0 : vector<16x256xf32> to vector<16x256xbf16>
    %c0_1 = arith.constant 0 : index
    %c0_2 = arith.constant 0 : index
    %2 = vector.load %arg2[%c0_1, %c0_2] : memref<256x384xbf16, #tpu.memory_space<vmem>>, vector<256x384xbf16>
    %cst = arith.constant dense<0.000000e+00> : vector<16x384xf32>
    %3 = tpu.matmul %1, %2, %cst {dimension_numbers = #tpu.dot_dimension_numbers<[1], [0], [0], [1], [0, 0, 1, 1], [], []>} : vector<16x256xbf16>, vector<256x384xbf16>, vector<16x384xf32> -> vector<16x384xf32>
    %4 = arith.truncf %3 : vector<16x384xf32> to vector<16x384xbf16>
    %5 = math.tanh %4 : vector<16x384xbf16>
    %cst_3 = arith.constant 5.000000e-01 : bf16
    %6 = vector.broadcast %cst_3 : bf16 to vector<16x384xbf16>
    %7 = arith.mulf %5, %6 : vector<16x384xbf16>
    %cst_4 = arith.constant 5.000000e-01 : bf16
    %8 = vector.broadcast %cst_4 : bf16 to vector<16x384xbf16>
    %9 = arith.addf %7, %8 : vector<16x384xbf16>
    %c0_5 = arith.constant 0 : index
    %c0_6 = arith.constant 0 : index
    %10 = vector.load %arg3[%c0_5, %c0_6] : memref<384x128xbf16, #tpu.memory_space<vmem>>, vector<384x128xbf16>
    %cst_7 = arith.constant dense<0.000000e+00> : vector<16x128xf32>
    %11 = tpu.matmul %9, %10, %cst_7 {dimension_numbers = #tpu.dot_dimension_numbers<[1], [0], [0], [1], [0, 0, 1, 1], [], []>} : vector<16x384xbf16>, vector<384x128xbf16>, vector<16x128xf32> -> vector<16x128xf32>
    %12 = arith.truncf %11 : vector<16x128xf32> to vector<16x128xbf16>
    %13 = math.tanh %12 : vector<16x128xbf16>
    %cst_8 = arith.constant 5.000000e-01 : bf16
    %14 = vector.broadcast %cst_8 : bf16 to vector<16x128xbf16>
    %15 = arith.mulf %13, %14 : vector<16x128xbf16>
    %cst_9 = arith.constant 5.000000e-01 : bf16
    %16 = vector.broadcast %cst_9 : bf16 to vector<16x128xbf16>
    %17 = arith.addf %15, %16 : vector<16x128xbf16>
    %c0_10 = arith.constant 0 : index
    %c0_11 = arith.constant 0 : index
    %18 = vector.load %arg4[%c0_10, %c0_11] : memref<128x128xbf16, #tpu.memory_space<vmem>>, vector<128x128xbf16>
    %cst_12 = arith.constant dense<0.000000e+00> : vector<16x128xf32>
    %19 = tpu.matmul %17, %18, %cst_12 {dimension_numbers = #tpu.dot_dimension_numbers<[1], [0], [0], [1], [0, 0, 1, 1], [], []>} : vector<16x128xbf16>, vector<128x128xbf16>, vector<16x128xf32> -> vector<16x128xf32>
    %20 = arith.truncf %19 : vector<16x128xf32> to vector<16x128xbf16>
    %21 = math.tanh %20 : vector<16x128xbf16>
    %cst_13 = arith.constant 5.000000e-01 : bf16
    %22 = vector.broadcast %cst_13 : bf16 to vector<16x128xbf16>
    %23 = arith.mulf %21, %22 : vector<16x128xbf16>
    %cst_14 = arith.constant 5.000000e-01 : bf16
    %24 = vector.broadcast %cst_14 : bf16 to vector<16x128xbf16>
    %25 = arith.addf %23, %24 : vector<16x128xbf16>
    %c0_15 = arith.constant 0 : index
    %c0_16 = arith.constant 0 : index
    %26 = vector.load %arg5[%c0_15, %c0_16] : memref<128x128xbf16, #tpu.memory_space<vmem>>, vector<128x128xbf16>
    %cst_17 = arith.constant dense<0.000000e+00> : vector<16x128xf32>
    %27 = tpu.matmul %25, %26, %cst_17 {dimension_numbers = #tpu.dot_dimension_numbers<[1], [0], [0], [1], [0, 0, 1, 1], [], []>} : vector<16x128xbf16>, vector<128x128xbf16>, vector<16x128xf32> -> vector<16x128xf32>
    %28 = arith.truncf %27 : vector<16x128xf32> to vector<16x128xbf16>
    %29 = math.tanh %28 : vector<16x128xbf16>
    %cst_18 = arith.constant 5.000000e-01 : bf16
    %30 = vector.broadcast %cst_18 : bf16 to vector<16x128xbf16>
    %31 = arith.mulf %29, %30 : vector<16x128xbf16>
    %cst_19 = arith.constant 5.000000e-01 : bf16
    %32 = vector.broadcast %cst_19 : bf16 to vector<16x128xbf16>
    %33 = arith.addf %31, %32 : vector<16x128xbf16>
    %c0_20 = arith.constant 0 : index
    %c0_21 = arith.constant 0 : index
    %34 = vector.load %arg6[%c0_20, %c0_21] : memref<128x384xbf16, #tpu.memory_space<vmem>>, vector<128x384xbf16>
    %cst_22 = arith.constant dense<0.000000e+00> : vector<16x384xf32>
    %35 = tpu.matmul %33, %34, %cst_22 {dimension_numbers = #tpu.dot_dimension_numbers<[1], [0], [0], [1], [0, 0, 1, 1], [], []>} : vector<16x128xbf16>, vector<128x384xbf16>, vector<16x384xf32> -> vector<16x384xf32>
    %36 = arith.truncf %35 : vector<16x384xf32> to vector<16x384xbf16>
    %37 = math.tanh %36 : vector<16x384xbf16>
    %cst_23 = arith.constant 5.000000e-01 : bf16
    %38 = vector.broadcast %cst_23 : bf16 to vector<16x384xbf16>
    %39 = arith.mulf %37, %38 : vector<16x384xbf16>
    %cst_24 = arith.constant 5.000000e-01 : bf16
    %40 = vector.broadcast %cst_24 : bf16 to vector<16x384xbf16>
    %41 = arith.addf %39, %40 : vector<16x384xbf16>
    %c0_25 = arith.constant 0 : index
    %c0_26 = arith.constant 0 : index
    %42 = vector.load %arg7[%c0_25, %c0_26] : memref<384x256xbf16, #tpu.memory_space<vmem>>, vector<384x256xbf16>
    %cst_27 = arith.constant dense<0.000000e+00> : vector<16x256xf32>
    %43 = tpu.matmul %41, %42, %cst_27 {dimension_numbers = #tpu.dot_dimension_numbers<[1], [0], [0], [1], [0, 0, 1, 1], [], []>} : vector<16x384xbf16>, vector<384x256xbf16>, vector<16x256xf32> -> vector<16x256xf32>
    %c0_28 = arith.constant 0 : index
    %c0_29 = arith.constant 0 : index
    %44 = vector.load %arg8[%c0_28, %c0_29] : memref<16x256xf32, #tpu.memory_space<vmem>>, vector<16x256xf32>
    tpu.vector_store %arg8[%c0_28, %c0_29], %43 {strides = array<i32>} : memref<16x256xf32, #tpu.memory_space<vmem>>, vector<16x256xf32>,
    return
  }
  func.func @transform_0(%arg0: i32) -> (i32, i32) {
    %c0_i32 = arith.constant 0 : i32
    %c0_i32_0 = arith.constant 0 : i32
    return %arg0, %c0_i32 : i32, i32
  }
  func.func @transform_1(%arg0: i32) -> (i32, i32) {
    %c0_i32 = arith.constant 0 : i32
    %c0_i32_0 = arith.constant 0 : i32
    %c0_i32_1 = arith.constant 0 : i32
    return %c0_i32, %c0_i32_0 : i32, i32
  }
  func.func @transform_2(%arg0: i32) -> (i32, i32) {
    %c0_i32 = arith.constant 0 : i32
    %c0_i32_0 = arith.constant 0 : i32
    %c0_i32_1 = arith.constant 0 : i32
    return %c0_i32, %c0_i32_0 : i32, i32
  }
  func.func @transform_3(%arg0: i32) -> (i32, i32) {
    %c0_i32 = arith.constant 0 : i32
    %c0_i32_0 = arith.constant 0 : i32
    %c0_i32_1 = arith.constant 0 : i32
    return %c0_i32, %c0_i32_0 : i32, i32
  }
  func.func @transform_4(%arg0: i32) -> (i32, i32) {
    %c0_i32 = arith.constant 0 : i32
    %c0_i32_0 = arith.constant 0 : i32
    %c0_i32_1 = arith.constant 0 : i32
    return %c0_i32, %c0_i32_0 : i32, i32
  }
  func.func @transform_5(%arg0: i32) -> (i32, i32) {
    %c0_i32 = arith.constant 0 : i32
    %c0_i32_0 = arith.constant 0 : i32
    %c0_i32_1 = arith.constant 0 : i32
    return %c0_i32, %c0_i32_0 : i32, i32
  }
  func.func @transform_6(%arg0: i32) -> (i32, i32) {
    %c0_i32 = arith.constant 0 : i32
    %c0_i32_0 = arith.constant 0 : i32
    %c0_i32_1 = arith.constant 0 : i32
    return %c0_i32, %c0_i32_0 : i32, i32
  }
  func.func @transform_7(%arg0: i32) -> (i32, i32) {
    %c0_i32 = arith.constant 0 : i32
    %c0_i32_0 = arith.constant 0 : i32
    return %arg0, %c0_i32 : i32, i32
  }
}

</mosaic_0001>

<llo_original>
// kernel: tpu_custom_call.1
$region0: #{tpu_custom_call.1}
  #allocation0 [shape = 'u32[]', space=smem, size = 0x4, offset = 0x4, fixed_abs, tag = 'smem constant byte address 0x4 - core index']
  #allocation1 [shape = 'u32[72,128]{1,0:T(1,128)}', space=vmem, size = 0x9000, scoped, tag = 'internal scratch']
  %s0 = inlined_call_operand.hbm [shape: f32[16,256], index: 0, kind: input, shape index: {}]
  %s1 = inlined_call_operand.hbm [shape: bf16[256,384], index: 1, kind: input, shape index: {}]
  %s2 = inlined_call_operand.hbm [shape: bf16[384,128], index: 2, kind: input, shape index: {}]
  %s3 = inlined_call_operand.hbm [shape: bf16[128,128], index: 3, kind: input, shape index: {}]
  %s4 = inlined_call_operand.hbm [shape: bf16[128,128], index: 4, kind: input, shape index: {}]
  %s5 = inlined_call_operand.hbm [shape: bf16[128,384], index: 5, kind: input, shape index: {}]
  %s6 = inlined_call_operand.hbm [shape: bf16[384,256], index: 6, kind: input, shape index: {}]
  %s7 = inlined_call_operand.hbm [shape: f32[16,256], index: 7, kind: output, shape index: {}]
  %s8 = sld [smem:[#allocation0]]
  $region66: #{tpu_custom_call.1} parent=0
    _
  %s10 = ssub.s32 1, %s8
  %s11 = scalar_select 0, %s10, %s8
  $region1: #{tpu_custom_call.1} parent=0
    #allocation2 [shape = 'u8[16384]{0}', space=vmem, size = 0x4000, scoped, tag = 'input window, operand 0, single buffered']
    #allocation3 [shape = 's32[1]{0}', space=sflag, size = 0x4, scoped, tag = 'scoped memory for tpu_custom_call.1']
    #allocation4 [shape = 's32[1]{0}', space=sflag, size = 0x4, scoped, tag = 'scoped memory for tpu_custom_call.1']
    #allocation5 [shape = 'u8[196608]{0}', space=vmem, size = 0x30000, scoped, tag = 'input window, operand 1, single buffered']
    #allocation6 [shape = 's32[1]{0}', space=sflag, size = 0x4, scoped, tag = 'scoped memory for tpu_custom_call.1']
    #allocation7 [shape = 'u8[98304]{0}', space=vmem, size = 0x18000, scoped, tag = 'input window, operand 2, single buffered']
    #allocation8 [shape = 'u8[32768]{0}', space=vmem, size = 0x8000, scoped, tag = 'input window, operand 3, single buffered']
    #allocation9 [shape = 's32[1]{0}', space=sflag, size = 0x4, scoped, tag = 'scoped memory for tpu_custom_call.1']
    #allocation10 [shape = 'u8[32768]{0}', space=vmem, size = 0x8000, scoped, tag = 'input window, operand 4, single buffered']
    #allocation11 [shape = 'u8[98304]{0}', space=vmem, size = 0x18000, scoped, tag = 'input window, operand 5, single buffered']
    #allocation12 [shape = 's32[1]{0}', space=sflag, size = 0x4, scoped, tag = 'scoped memory for tpu_custom_call.1']
    #allocation13 [shape = 'u8[196608]{0}', space=vmem, size = 0x30000, scoped, tag = 'input window, operand 6, single buffered']
    #allocation14 [shape = 'u8[16384]{0}', space=vmem, size = 0x4000, scoped, tag = 'output window, operand 0, single buffered']
    %12 = vsyncpa [#allocation3], 0
    %13 = vsyncpa [#allocation6], 0
    %14 = vsyncpa [#allocation9], 0
    %15 = vsyncpa [#allocation12], 0
    %16 = vsyncpa [#allocation4], 0
    // Predicated region
    $region2: #{tpu_custom_call.1} parent=1 // pred_check
      _
    $region3: #{tpu_custom_call.1} parent=1 // pred_check_branch
      %18 = sbr.rel (0) target = $region5
    $region4: #{tpu_custom_call.1} parent=1 // pred_region
      %20 = vsyncadd [#allocation3], 0
      %s21 = sshll.u32 %s0, 4
      %s22 = int_to_ptr.hbm [resolvable:$true] %s21
      %s23 = sshll.u32 [#allocation2], 4
      %s24 = int_to_ptr.vmem [resolvable:$true] %s23
      %29 = dma.hbm_to_vmem [thread:$0]  %s22, 512, %s24, [#allocation3], 256, 256, 16
    $region5: #{tpu_custom_call.1} parent=1 // pred_fallthru
      _
    // Predicated region
    $region6: #{tpu_custom_call.1} parent=1 // pred_check
      _
    $region7: #{tpu_custom_call.1} parent=1 // pred_check_branch
      %31 = sbr.rel (0) target = $region9
    $region8: #{tpu_custom_call.1} parent=1 // pred_region
      %33 = vsyncadd [#allocation6], 0
      %s34 = sshll.u32 %s1, 4
      %s35 = int_to_ptr.hbm [resolvable:$true] %s34
      %s36 = sshll.u32 [#allocation5], 4
      %s37 = int_to_ptr.vmem [resolvable:$true] %s36
      %42 = dma.hbm_to_vmem [thread:$0]  %s35, 6144, %s37, [#allocation6], 192, 192, 12
    $region9: #{tpu_custom_call.1} parent=1 // pred_fallthru
      _
    // Predicated region
    $region10: #{tpu_custom_call.1} parent=1 // pred_check
      _
    $region11: #{tpu_custom_call.1} parent=1 // pred_check_branch
      %44 = sbr.rel (0) target = $region13
    $region12: #{tpu_custom_call.1} parent=1 // pred_region
      %46 = vsyncadd [#allocation6], 0
      %s47 = sshll.u32 %s2, 4
      %s48 = int_to_ptr.hbm [resolvable:$true] %s47
      %s49 = sshll.u32 [#allocation7], 4
      %s50 = int_to_ptr.vmem [resolvable:$true] %s49
      %55 = dma.hbm_to_vmem [thread:$0]  %s48, 3072, %s50, [#allocation6], 64, 64, 4
    $region13: #{tpu_custom_call.1} parent=1 // pred_fallthru
      _
    // Predicated region
    $region14: #{tpu_custom_call.1} parent=1 // pred_check
      _
    $region15: #{tpu_custom_call.1} parent=1 // pred_check_branch
      %57 = sbr.rel (0) target = $region17
    $region16: #{tpu_custom_call.1} parent=1 // pred_region
      %59 = vsyncadd [#allocation9], 0
      %s60 = sshll.u32 %s3, 4
      %s61 = int_to_ptr.hbm [resolvable:$true] %s60
      %s62 = sshll.u32 [#allocation8], 4
      %s63 = int_to_ptr.vmem [resolvable:$true] %s62
      %68 = dma.hbm_to_vmem [thread:$0]  %s61, 1024, %s63, [#allocation9], 64, 64, 4
    $region17: #{tpu_custom_call.1} parent=1 // pred_fallthru
      _
    // Predicated region
    $region18: #{tpu_custom_call.1} parent=1 // pred_check
      _
    $region19: #{tpu_custom_call.1} parent=1 // pred_check_branch
      %70 = sbr.rel (0) target = $region21
    $region20: #{tpu_custom_call.1} parent=1 // pred_region
      %72 = vsyncadd [#allocation9], 0
      %s73 = sshll.u32 %s4, 4
      %s74 = int_to_ptr.hbm [resolvable:$true] %s73
      %s75 = sshll.u32 [#allocation10], 4
      %s76 = int_to_ptr.vmem [resolvable:$true] %s75
      %81 = dma.hbm_to_vmem [thread:$0]  %s74, 1024, %s76, [#allocation9], 64, 64, 4
    $region21: #{tpu_custom_call.1} parent=1 // pred_fallthru
      _
    // Predicated region
    $region22: #{tpu_custom_call.1} parent=1 // pred_check
      _
    $region23: #{tpu_custom_call.1} parent=1 // pred_check_branch
      %83 = sbr.rel (0) target = $region25
    $region24: #{tpu_custom_call.1} parent=1 // pred_region
      %85 = vsyncadd [#allocation12], 0
      %s86 = sshll.u32 %s5, 4
      %s87 = int_to_ptr.hbm [resolvable:$true] %s86
      %s88 = sshll.u32 [#allocation11], 4
      %s89 = int_to_ptr.vmem [resolvable:$true] %s88
      %94 = dma.hbm_to_vmem [thread:$0]  %s87, 3072, %s89, [#allocation12], 192, 192, 12
    $region25: #{tpu_custom_call.1} parent=1 // pred_fallthru
      _
    // Predicated region
    $region26: #{tpu_custom_call.1} parent=1 // pred_check
      _
    $region27: #{tpu_custom_call.1} parent=1 // pred_check_branch
      %96 = sbr.rel (0) target = $region29
    $region28: #{tpu_custom_call.1} parent=1 // pred_region
      %98 = vsyncadd [#allocation12], 0
      %s99 = sshll.u32 %s6, 4
      %s100 = int_to_ptr.hbm [resolvable:$true] %s99
      %s101 = sshll.u32 [#allocation13], 4
      %s102 = int_to_ptr.vmem [resolvable:$true] %s101
      %107 = dma.hbm_to_vmem [thread:$0]  %s100, 6144, %s102, [#allocation12], 128, 128, 8
    $region29: #{tpu_custom_call.1} parent=1 // pred_fallthru
      _
    // Predicated region
    $region30: #{tpu_custom_call.1} parent=1 // pred_check
      _
    $region31: #{tpu_custom_call.1} parent=1 // pred_check_branch
      %109 = sbr.rel (0) target = $region33
    $region32: #{tpu_custom_call.1} parent=1 // pred_region
      %111 = dma.done [#allocation3], 512
    $region33: #{tpu_custom_call.1} parent=1 // pred_fallthru
      _
    // Predicated region
    $region34: #{tpu_custom_call.1} parent=1 // pred_check
      _
    $region35: #{tpu_custom_call.1} parent=1 // pred_check_branch
      %113 = sbr.rel (0) target = $region37
    $region36: #{tpu_custom_call.1} parent=1 // pred_region
      %115 = dma.done [#allocation6], 6144
    $region37: #{tpu_custom_call.1} parent=1 // pred_fallthru
      _
    // Predicated region
    $region38: #{tpu_custom_call.1} parent=1 // pred_check
      _
    $region39: #{tpu_custom_call.1} parent=1 // pred_check_branch
      %117 = sbr.rel (0) target = $region41
    $region40: #{tpu_custom_call.1} parent=1 // pred_region
      %119 = dma.done [#allocation6], 3072
    $region41: #{tpu_custom_call.1} parent=1 // pred_fallthru
      _
    // Predicated region
    $region42: #{tpu_custom_call.1} parent=1 // pred_check
      _
    $region43: #{tpu_custom_call.1} parent=1 // pred_check_branch
      %121 = sbr.rel (0) target = $region45
    $region44: #{tpu_custom_call.1} parent=1 // pred_region
      %123 = dma.done [#allocation9], 1024
    $region45: #{tpu_custom_call.1} parent=1 // pred_fallthru
      _
    // Predicated region
    $region46: #{tpu_custom_call.1} parent=1 // pred_check
      _
    $region47: #{tpu_custom_call.1} parent=1 // pred_check_branch
      %125 = sbr.rel (0) target = $region49
    $region48: #{tpu_custom_call.1} parent=1 // pred_region
      %127 = dma.done [#allocation9], 1024
    $region49: #{tpu_custom_call.1} parent=1 // pred_fallthru
      _
    // Predicated region
    $region50: #{tpu_custom_call.1} parent=1 // pred_check
      _
    $region51: #{tpu_custom_call.1} parent=1 // pred_check_branch
      %129 = sbr.rel (0) target = $region53
    $region52: #{tpu_custom_call.1} parent=1 // pred_region
      %131 = dma.done [#allocation12], 3072
    $region53: #{tpu_custom_call.1} parent=1 // pred_fallthru
      _
    // Predicated region
    $region54: #{tpu_custom_call.1} parent=1 // pred_check
      _
    $region55: #{tpu_custom_call.1} parent=1 // pred_check_branch
      %133 = sbr.rel (0) target = $region57
    $region56: #{tpu_custom_call.1} parent=1 // pred_region
      %135 = dma.done [#allocation12], 6144
    $region57: #{tpu_custom_call.1} parent=1 // pred_fallthru
      _
    %v136 = vld [vmem:[#allocation2] sm:$0xff]
    %v137 = vld [vmem:[#allocation2 + $0x8] sm:$0xff]
    %v138 = vld [vmem:[#allocation2 + $0x10] sm:$0xff]
    %v139 = vld [vmem:[#allocation2 + $0x18] sm:$0xff]
    %v140 = vpack.c.bf16 %v138, %v136
    %v141 = vpack.c.bf16 %v139, %v137
    %v142 = vld [vmem:[#allocation5] sm:$0xff]
    %v143 = vld [vmem:[#allocation5 + $0x8] sm:$0xf]
    %v144 = vld [vmem:[#allocation5 + $0xc] sm:$0xff]
    %v145 = vld [vmem:[#allocation5 + $0x14] sm:$0xf]
    %v146 = vld [vmem:[#allocation5 + $0x18] sm:$0xff]
    %v147 = vld [vmem:[#allocation5 + $0x20] sm:$0xf]
    %v148 = vld [vmem:[#allocation5 + $0x24] sm:$0xff]
    %v149 = vld [vmem:[#allocation5 + $0x2c] sm:$0xf]
    %v150 = vld [vmem:[#allocation5 + $0x30] sm:$0xff]
    %v151 = vld [vmem:[#allocation5 + $0x38] sm:$0xf]
    %v152 = vld [vmem:[#allocation5 + $0x3c] sm:$0xff]
    %v153 = vld [vmem:[#allocation5 + $0x44] sm:$0xf]
    %v154 = vld [vmem:[#allocation5 + $0x48] sm:$0xff]
    %v155 = vld [vmem:[#allocation5 + $0x50] sm:$0xf]
    %v156 = vld [vmem:[#allocation5 + $0x54] sm:$0xff]
    %v157 = vld [vmem:[#allocation5 + $0x5c] sm:$0xf]
    %v158 = vld [vmem:[#allocation5 + $0x60] sm:$0xff]
    %v159 = vld [vmem:[#allocation5 + $0x68] sm:$0xf]
    %v160 = vld [vmem:[#allocation5 + $0x6c] sm:$0xff]
    %v161 = vld [vmem:[#allocation5 + $0x74] sm:$0xf]
    %v162 = vld [vmem:[#allocation5 + $0x78] sm:$0xff]
    %v163 = vld [vmem:[#allocation5 + $0x80] sm:$0xf]
    %v164 = vld [vmem:[#allocation5 + $0x84] sm:$0xff]
    %v165 = vld [vmem:[#allocation5 + $0x8c] sm:$0xf]
    %v166 = vld [vmem:[#allocation5 + $0x90] sm:$0xff]
    %v167 = vld [vmem:[#allocation5 + $0x98] sm:$0xf]
    %v168 = vld [vmem:[#allocation5 + $0x9c] sm:$0xff]
    %v169 = vld [vmem:[#allocation5 + $0xa4] sm:$0xf]
    %v170 = vld [vmem:[#allocation5 + $0xa8] sm:$0xff]
    %v171 = vld [vmem:[#allocation5 + $0xb0] sm:$0xf]
    %v172 = vld [vmem:[#allocation5 + $0xb4] sm:$0xff]
    %v173 = vld [vmem:[#allocation5 + $0xbc] sm:$0xf]
    %v174 = vld [vmem:[#allocation5 + $0xc0] sm:$0xff]
    %v175 = vld [vmem:[#allocation5 + $0xc8] sm:$0xf]
    %v176 = vld [vmem:[#allocation5 + $0xcc] sm:$0xff]
    %v177 = vld [vmem:[#allocation5 + $0xd4] sm:$0xf]
    %v178 = vld [vmem:[#allocation5 + $0xd8] sm:$0xff]
    %v179 = vld [vmem:[#allocation5 + $0xe0] sm:$0xf]
    %v180 = vld [vmem:[#allocation5 + $0xe4] sm:$0xff]
    %v181 = vld [vmem:[#allocation5 + $0xec] sm:$0xf]
    %v182 = vld [vmem:[#allocation5 + $0xf0] sm:$0xff]
    %v183 = vld [vmem:[#allocation5 + $0xf8] sm:$0xf]
    %v184 = vld [vmem:[#allocation5 + $0xfc] sm:$0xff]
    %v185 = vld [vmem:[#allocation5 + $0x104] sm:$0xf]
    %v186 = vld [vmem:[#allocation5 + $0x108] sm:$0xff]
    %v187 = vld [vmem:[#allocation5 + $0x110] sm:$0xf]
    %v188 = vld [vmem:[#allocation5 + $0x114] sm:$0xff]
    %v189 = vld [vmem:[#allocation5 + $0x11c] sm:$0xf]
    %v190 = vld [vmem:[#allocation5 + $0x120] sm:$0xff]
    %v191 = vld [vmem:[#allocation5 + $0x128] sm:$0xf]
    %v192 = vld [vmem:[#allocation5 + $0x12c] sm:$0xff]
    %v193 = vld [vmem:[#allocation5 + $0x134] sm:$0xf]
    %v194 = vld [vmem:[#allocation5 + $0x138] sm:$0xff]
    %v195 = vld [vmem:[#allocation5 + $0x140] sm:$0xf]
    %v196 = vld [vmem:[#allocation5 + $0x144] sm:$0xff]
    %v197 = vld [vmem:[#allocation5 + $0x14c] sm:$0xf]
    %v198 = vld [vmem:[#allocation5 + $0x150] sm:$0xff]
    %v199 = vld [vmem:[#allocation5 + $0x158] sm:$0xf]
    %v200 = vld [vmem:[#allocation5 + $0x15c] sm:$0xff]
    %v201 = vld [vmem:[#allocation5 + $0x164] sm:$0xf]
    %v202 = vld [vmem:[#allocation5 + $0x168] sm:$0xff]
    %v203 = vld [vmem:[#allocation5 + $0x170] sm:$0xf]
    %v204 = vld [vmem:[#allocation5 + $0x174] sm:$0xff]
    %v205 = vld [vmem:[#allocation5 + $0x17c] sm:$0xf]
    %v270 = vunpack.c.l.b16 %v142
    %v271 = vunpack.c.h.b16 %v142
    %v272 = vunpack.c.l.b16 %v143
    %v273 = vunpack.c.l.b16 %v144
    %v274 = vunpack.c.h.b16 %v144
    %v275 = vunpack.c.l.b16 %v145
    %v276 = vunpack.c.l.b16 %v146
    %v277 = vunpack.c.h.b16 %v146
    %v278 = vunpack.c.l.b16 %v147
    %v279 = vunpack.c.l.b16 %v148
    %v280 = vunpack.c.h.b16 %v148
    %v281 = vunpack.c.l.b16 %v149
    %v282 = vunpack.c.l.b16 %v150
    %v283 = vunpack.c.h.b16 %v150
    %v284 = vunpack.c.l.b16 %v151
    %v285 = vunpack.c.l.b16 %v152
    %v286 = vunpack.c.h.b16 %v152
    %v287 = vunpack.c.l.b16 %v153
    %v288 = vunpack.c.l.b16 %v154
    %v289 = vunpack.c.h.b16 %v154
    %v290 = vunpack.c.l.b16 %v155
    %v291 = vunpack.c.l.b16 %v156
    %v292 = vunpack.c.h.b16 %v156
    %v293 = vunpack.c.l.b16 %v157
    %v294 = vunpack.c.l.b16 %v158
    %v295 = vunpack.c.h.b16 %v158
    %v296 = vunpack.c.l.b16 %v159
    %v297 = vunpack.c.l.b16 %v160
    %v298 = vunpack.c.h.b16 %v160
    %v299 = vunpack.c.l.b16 %v161
    %v300 = vunpack.c.l.b16 %v162
    %v301 = vunpack.c.h.b16 %v162
    %v302 = vunpack.c.l.b16 %v163
    %v303 = vunpack.c.l.b16 %v164
    %v304 = vunpack.c.h.b16 %v164
    %v305 = vunpack.c.l.b16 %v165
    %v306 = vunpack.c.l.b16 %v166
    %v307 = vunpack.c.h.b16 %v166
    %v308 = vunpack.c.l.b16 %v167
    %v309 = vunpack.c.l.b16 %v168
    %v310 = vunpack.c.h.b16 %v168
    %v311 = vunpack.c.l.b16 %v169
    %v312 = vunpack.c.l.b16 %v170
    %v313 = vunpack.c.h.b16 %v170
    %v314 = vunpack.c.l.b16 %v171
    %v315 = vunpack.c.l.b16 %v172
    %v316 = vunpack.c.h.b16 %v172
    %v317 = vunpack.c.l.b16 %v173
    %v318 = vunpack.c.l.b16 %v174
    %v319 = vunpack.c.h.b16 %v174
    %v320 = vunpack.c.l.b16 %v175
    %v321 = vunpack.c.l.b16 %v176
    %v322 = vunpack.c.h.b16 %v176
    %v323 = vunpack.c.l.b16 %v177
    %v324 = vunpack.c.l.b16 %v178
    %v325 = vunpack.c.h.b16 %v178
    %v326 = vunpack.c.l.b16 %v179
    %v327 = vunpack.c.l.b16 %v180
    %v328 = vunpack.c.h.b16 %v180
    %v329 = vunpack.c.l.b16 %v181
    %v330 = vunpack.c.l.b16 %v182
    %v331 = vunpack.c.h.b16 %v182
    %v332 = vunpack.c.l.b16 %v183
    %v333 = vunpack.c.l.b16 %v184
    %v334 = vunpack.c.h.b16 %v184
    %v335 = vunpack.c.l.b16 %v185
    %v336 = vunpack.c.l.b16 %v186
    %v337 = vunpack.c.h.b16 %v186
    %v338 = vunpack.c.l.b16 %v187
    %v339 = vunpack.c.l.b16 %v188
    %v340 = vunpack.c.h.b16 %v188
    %v341 = vunpack.c.l.b16 %v189
    %v342 = vunpack.c.l.b16 %v190
    %v343 = vunpack.c.h.b16 %v190
    %v344 = vunpack.c.l.b16 %v191
    %v345 = vunpack.c.l.b16 %v192
    %v346 = vunpack.c.h.b16 %v192
    %v347 = vunpack.c.l.b16 %v193
    %v348 = vunpack.c.l.b16 %v194
    %v349 = vunpack.c.h.b16 %v194
    %v350 = vunpack.c.l.b16 %v195
    %v351 = vunpack.c.l.b16 %v196
    %v352 = vunpack.c.h.b16 %v196
    %v353 = vunpack.c.l.b16 %v197
    %v354 = vunpack.c.l.b16 %v198
    %v355 = vunpack.c.h.b16 %v198
    %v356 = vunpack.c.l.b16 %v199
    %v357 = vunpack.c.l.b16 %v200
    %v358 = vunpack.c.h.b16 %v200
    %v359 = vunpack.c.l.b16 %v201
    %v360 = vunpack.c.l.b16 %v202
    %v361 = vunpack.c.h.b16 %v202
    %v362 = vunpack.c.l.b16 %v203
    %v363 = vunpack.c.l.b16 %v204
    %v364 = vunpack.c.h.b16 %v204
    %v365 = vunpack.c.l.b16 %v205
    %v366 = vpack.c.b16 %v273, %v270
    %v367 = vpack.c.b16 %v274, %v271
    %v368 = vpack.c.b16 %v275, %v272
    %v369 = vpack.c.b16 %v279, %v276
    %v370 = vpack.c.b16 %v280, %v277
    %v371 = vpack.c.b16 %v281, %v278
    %v372 = vpack.c.b16 %v285, %v282
    %v373 = vpack.c.b16 %v286, %v283
    %v374 = vpack.c.b16 %v287, %v284
    %v375 = vpack.c.b16 %v291, %v288
    %v376 = vpack.c.b16 %v292, %v289
    %v377 = vpack.c.b16 %v293, %v290
    %v378 = vpack.c.b16 %v297, %v294
    %v379 = vpack.c.b16 %v298, %v295
    %v380 = vpack.c.b16 %v299, %v296
    %v381 = vpack.c.b16 %v303, %v300
    %v382 = vpack.c.b16 %v304, %v301
    %v383 = vpack.c.b16 %v305, %v302
    %v384 = vpack.c.b16 %v309, %v306
    %v385 = vpack.c.b16 %v310, %v307
    %v386 = vpack.c.b16 %v311, %v308
    %v387 = vpack.c.b16 %v315, %v312
    %v388 = vpack.c.b16 %v316, %v313
    %v389 = vpack.c.b16 %v317, %v314
    %v390 = vpack.c.b16 %v321, %v318
    %v391 = vpack.c.b16 %v322, %v319
    %v392 = vpack.c.b16 %v323, %v320
    %v393 = vpack.c.b16 %v327, %v324
    %v394 = vpack.c.b16 %v328, %v325
    %v395 = vpack.c.b16 %v329, %v326
    %v396 = vpack.c.b16 %v333, %v330
    %v397 = vpack.c.b16 %v334, %v331
    %v398 = vpack.c.b16 %v335, %v332
    %v399 = vpack.c.b16 %v339, %v336
    %v400 = vpack.c.b16 %v340, %v337
    %v401 = vpack.c.b16 %v341, %v338
    %v402 = vpack.c.b16 %v345, %v342
    %v403 = vpack.c.b16 %v346, %v343
    %v404 = vpack.c.b16 %v347, %v344
    %v405 = vpack.c.b16 %v351, %v348
    %v406 = vpack.c.b16 %v352, %v349
    %v407 = vpack.c.b16 %v353, %v350
    %v408 = vpack.c.b16 %v357, %v354
    %v409 = vpack.c.b16 %v358, %v355
    %v410 = vpack.c.b16 %v359, %v356
    %v411 = vpack.c.b16 %v363, %v360
    %v412 = vpack.c.b16 %v364, %v361
    %v413 = vpack.c.b16 %v365, %v362
    %462 = vmatpush.bf16.msra.mxu0 %v387
    %463 = vmatpush.bf16.msra.mxu0 %v384
    %464 = vmatpush.bf16.msra.mxu0 %v381
    %465 = vmatpush.bf16.msra.mxu0 %v378
    %466 = vmatpush.bf16.msra.mxu0 %v375
    %467 = vmatpush.bf16.msra.mxu0 %v372
    %468 = vmatpush.bf16.msra.mxu0 %v369
    %469 = vmatpush.bf16.msra.mxu0 %v366
    %470 = vmatmul.bf16.gmra.mxu0 %v140
    %v471 = vpop.f32.mrf.mxu0
    %v472 = vadd.f32 0.0, %v471
    %v473 = vpop.f32.mrf.mxu0
    %v474 = vadd.f32 0.0, %v473
    %475 = vdwg.mxu0
    %476 = vmatpush.bf16.msra.mxu0 %v411
    %477 = vmatpush.bf16.msra.mxu0 %v408
    %478 = vmatpush.bf16.msra.mxu0 %v405
    %479 = vmatpush.bf16.msra.mxu0 %v402
    %480 = vmatpush.bf16.msra.mxu0 %v399
    %481 = vmatpush.bf16.msra.mxu0 %v396
    %482 = vmatpush.bf16.msra.mxu0 %v393
    %483 = vmatpush.bf16.msra.mxu0 %v390
    %484 = vmatmul.bf16.gmra.mxu0 %v141
    %v485 = vpop.f32.mrf.mxu0
    %v486 = vadd.f32 %v472, %v485
    %v487 = vpop.f32.mrf.mxu0
    %v488 = vadd.f32 %v474, %v487
    %489 = vdwg.mxu0
    %490 = vmatpush.bf16.msra.mxu0 %v388
    %491 = vmatpush.bf16.msra.mxu0 %v385
    %492 = vmatpush.bf16.msra.mxu0 %v382
    %493 = vmatpush.bf16.msra.mxu0 %v379
    %494 = vmatpush.bf16.msra.mxu0 %v376
    %495 = vmatpush.bf16.msra.mxu0 %v373
    %496 = vmatpush.bf16.msra.mxu0 %v370
    %497 = vmatpush.bf16.msra.mxu0 %v367
    %498 = vmatmul.bf16.gmra.mxu0 %v140
    %v499 = vpop.f32.mrf.mxu0
    %v500 = vadd.f32 0.0, %v499
    %v501 = vpop.f32.mrf.mxu0
    %v502 = vadd.f32 0.0, %v501
    %503 = vdwg.mxu0
    %504 = vmatpush.bf16.msra.mxu0 %v412
    %505 = vmatpush.bf16.msra.mxu0 %v409
    %506 = vmatpush.bf16.msra.mxu0 %v406
    %507 = vmatpush.bf16.msra.mxu0 %v403
    %508 = vmatpush.bf16.msra.mxu0 %v400
    %509 = vmatpush.bf16.msra.mxu0 %v397
    %510 = vmatpush.bf16.msra.mxu0 %v394
    %511 = vmatpush.bf16.msra.mxu0 %v391
    %512 = vmatmul.bf16.gmra.mxu0 %v141
    %v513 = vpop.f32.mrf.mxu0
    %v514 = vadd.f32 %v500, %v513
    %v515 = vpop.f32.mrf.mxu0
    %v516 = vadd.f32 %v502, %v515
    %517 = vdwg.mxu0
    %518 = vmatpush.bf16.msra.mxu0 %v389
    %519 = vmatpush.bf16.msra.mxu0 %v386
    %520 = vmatpush.bf16.msra.mxu0 %v383
    %521 = vmatpush.bf16.msra.mxu0 %v380
    %522 = vmatpush.bf16.msra.mxu0 %v377
    %523 = vmatpush.bf16.msra.mxu0 %v374
    %524 = vmatpush.bf16.msra.mxu0 %v371
    %525 = vmatpush.bf16.msra.mxu0 %v368
    %526 = vmatmul.bf16.gmra.mxu0 %v140
    %v527 = vpop.f32.mrf.mxu0
    %v528 = vadd.f32 0.0, %v527
    %v529 = vpop.f32.mrf.mxu0
    %v530 = vadd.f32 0.0, %v529
    %531 = vdwg.mxu0
    %532 = vmatpush.bf16.msra.mxu0 %v413
    %533 = vmatpush.bf16.msra.mxu0 %v410
    %534 = vmatpush.bf16.msra.mxu0 %v407
    %535 = vmatpush.bf16.msra.mxu0 %v404
    %536 = vmatpush.bf16.msra.mxu0 %v401
    %537 = vmatpush.bf16.msra.mxu0 %v398
    %538 = vmatpush.bf16.msra.mxu0 %v395
    %539 = vmatpush.bf16.msra.mxu0 %v392
    %540 = vmatmul.bf16.gmra.mxu0 %v141
    %v541 = vpop.f32.mrf.mxu0
    %v542 = vadd.f32 %v528, %v541
    %v543 = vpop.f32.mrf.mxu0
    %v544 = vadd.f32 %v530, %v543
    %545 = vdwg.mxu0
    %v546 = vpack.c.bf16 %v514, %v486
    %v547 = vpack.c.bf16 %v542, %v542
    %v548 = vpack.c.bf16 %v516, %v488
    %v549 = vpack.c.bf16 %v544, %v544
    %v550 = vunpack.c.l.bf16 %v546
    %v551 = vunpack.c.h.bf16 %v546
    %v552 = vunpack.c.l.bf16 %v547
    %v553 = vunpack.c.l.bf16 %v548
    %v554 = vunpack.c.h.bf16 %v548
    %v555 = vunpack.c.l.bf16 %v549
    %v556 = vtanh.pop %v550
    %v557 = vtanh.pop %v551
    %v558 = vtanh.pop %v552
    %v559 = vtanh.pop %v553
    %v560 = vtanh.pop %v554
    %v561 = vtanh.pop %v555
    %v562 = vpack.c.bf16 %v557, %v556
    %v563 = vpack.c.bf16 %v558, %v558
    %v564 = vpack.c.bf16 %v560, %v559
    %v565 = vpack.c.bf16 %v561, %v561
    %v566 = vunpack.c.l.bf16 %v562
    %v567 = vunpack.c.h.bf16 %v562
    %v568 = vunpack.c.l.bf16 %v563
    %v569 = vunpack.c.l.bf16 %v564
    %v570 = vunpack.c.h.bf16 %v564
    %v571 = vunpack.c.l.bf16 %v565
    %v572 = vmul.f32 %v566, 0.5
    %v573 = vmul.f32 %v567, 0.5
    %v574 = vmul.f32 %v568, 0.5
    %v575 = vmul.f32 %v569, 0.5
    %v576 = vmul.f32 %v570, 0.5
    %v577 = vmul.f32 %v571, 0.5
    %v578 = vpack.c.bf16 %v573, %v572
    %v579 = vpack.c.bf16 %v574, %v574
    %v580 = vpack.c.bf16 %v576, %v575
    %v581 = vpack.c.bf16 %v577, %v577
    %v582 = vunpack.c.l.bf16 %v578
    %v583 = vunpack.c.h.bf16 %v578
    %v584 = vunpack.c.l.bf16 %v579
    %v585 = vunpack.c.l.bf16 %v580
    %v586 = vunpack.c.h.bf16 %v580
    %v587 = vunpack.c.l.bf16 %v581
    %v588 = vadd.f32 %v582, 0.5
    %v589 = vadd.f32 %v583, 0.5
    %v590 = vadd.f32 %v584, 0.5
    %v591 = vadd.f32 %v585, 0.5
    %v592 = vadd.f32 %v586, 0.5
    %v593 = vadd.f32 %v587, 0.5
    %v594 = vpack.c.bf16 %v591, %v588
    %v595 = vpack.c.bf16 %v592, %v589
    %v596 = vpack.c.bf16 %v593, %v590
    %v597 = vld [vmem:[#allocation7] sm:$0xf]
    %v598 = vld [vmem:[#allocation7 + $0x4] sm:$0xf]
    %v599 = vld [vmem:[#allocation7 + $0x8] sm:$0xf]
    %v600 = vld [vmem:[#allocation7 + $0xc] sm:$0xf]
    %v601 = vld [vmem:[#allocation7 + $0x10] sm:$0xf]
    %v602 = vld [vmem:[#allocation7 + $0x14] sm:$0xf]
    %v603 = vld [vmem:[#allocation7 + $0x18] sm:$0xf]
    %v604 = vld [vmem:[#allocation7 + $0x1c] sm:$0xf]
    %v605 = vld [vmem:[#allocation7 + $0x20] sm:$0xf]
    %v606 = vld [vmem:[#allocation7 + $0x24] sm:$0xf]
    %v607 = vld [vmem:[#allocation7 + $0x28] sm:$0xf]
    %v608 = vld [vmem:[#allocation7 + $0x2c] sm:$0xf]
    %v609 = vld [vmem:[#allocation7 + $0x30] sm:$0xf]
    %v610 = vld [vmem:[#allocation7 + $0x34] sm:$0xf]
    %v611 = vld [vmem:[#allocation7 + $0x38] sm:$0xf]
    %v612 = vld [vmem:[#allocation7 + $0x3c] sm:$0xf]
    %v613 = vld [vmem:[#allocation7 + $0x40] sm:$0xf]
    %v614 = vld [vmem:[#allocation7 + $0x44] sm:$0xf]
    %v615 = vld [vmem:[#allocation7 + $0x48] sm:$0xf]
    %v616 = vld [vmem:[#allocation7 + $0x4c] sm:$0xf]
    %v617 = vld [vmem:[#allocation7 + $0x50] sm:$0xf]
    %v618 = vld [vmem:[#allocation7 + $0x54] sm:$0xf]
    %v619 = vld [vmem:[#allocation7 + $0x58] sm:$0xf]
    %v620 = vld [vmem:[#allocation7 + $0x5c] sm:$0xf]
    %v621 = vld [vmem:[#allocation7 + $0x60] sm:$0xf]
    %v622 = vld [vmem:[#allocation7 + $0x64] sm:$0xf]
    %v623 = vld [vmem:[#allocation7 + $0x68] sm:$0xf]
    %v624 = vld [vmem:[#allocation7 + $0x6c] sm:$0xf]
    %v625 = vld [vmem:[#allocation7 + $0x70] sm:$0xf]
    %v626 = vld [vmem:[#allocation7 + $0x74] sm:$0xf]
    %v627 = vld [vmem:[#allocation7 + $0x78] sm:$0xf]
    %v628 = vld [vmem:[#allocation7 + $0x7c] sm:$0xf]
    %v629 = vld [vmem:[#allocation7 + $0x80] sm:$0xf]
    %v630 = vld [vmem:[#allocation7 + $0x84] sm:$0xf]
    %v631 = vld [vmem:[#allocation7 + $0x88] sm:$0xf]
    %v632 = vld [vmem:[#allocation7 + $0x8c] sm:$0xf]
    %v633 = vld [vmem:[#allocation7 + $0x90] sm:$0xf]
    %v634 = vld [vmem:[#allocation7 + $0x94] sm:$0xf]
    %v635 = vld [vmem:[#allocation7 + $0x98] sm:$0xf]
    %v636 = vld [vmem:[#allocation7 + $0x9c] sm:$0xf]
    %v637 = vld [vmem:[#allocation7 + $0xa0] sm:$0xf]
    %v638 = vld [vmem:[#allocation7 + $0xa4] sm:$0xf]
    %v639 = vld [vmem:[#allocation7 + $0xa8] sm:$0xf]
    %v640 = vld [vmem:[#allocation7 + $0xac] sm:$0xf]
    %v641 = vld [vmem:[#allocation7 + $0xb0] sm:$0xf]
    %v642 = vld [vmem:[#allocation7 + $0xb4] sm:$0xf]
    %v643 = vld [vmem:[#allocation7 + $0xb8] sm:$0xf]
    %v644 = vld [vmem:[#allocation7 + $0xbc] sm:$0xf]
    %v693 = vunpack.c.l.b16 %v597
    %v694 = vunpack.c.l.b16 %v598
    %v695 = vunpack.c.l.b16 %v599
    %v696 = vunpack.c.l.b16 %v600
    %v697 = vunpack.c.l.b16 %v601
    %v698 = vunpack.c.l.b16 %v602
    %v699 = vunpack.c.l.b16 %v603
    %v700 = vunpack.c.l.b16 %v604
    %v701 = vunpack.c.l.b16 %v605
    %v702 = vunpack.c.l.b16 %v606
    %v703 = vunpack.c.l.b16 %v607
    %v704 = vunpack.c.l.b16 %v608
    %v705 = vunpack.c.l.b16 %v609
    %v706 = vunpack.c.l.b16 %v610
    %v707 = vunpack.c.l.b16 %v611
    %v708 = vunpack.c.l.b16 %v612
    %v709 = vunpack.c.l.b16 %v613
    %v710 = vunpack.c.l.b16 %v614
    %v711 = vunpack.c.l.b16 %v615
    %v712 = vunpack.c.l.b16 %v616
    %v713 = vunpack.c.l.b16 %v617
    %v714 = vunpack.c.l.b16 %v618
    %v715 = vunpack.c.l.b16 %v619
    %v716 = vunpack.c.l.b16 %v620
    %v717 = vunpack.c.l.b16 %v621
    %v718 = vunpack.c.l.b16 %v622
    %v719 = vunpack.c.l.b16 %v623
    %v720 = vunpack.c.l.b16 %v624
    %v721 = vunpack.c.l.b16 %v625
    %v722 = vunpack.c.l.b16 %v626
    %v723 = vunpack.c.l.b16 %v627
    %v724 = vunpack.c.l.b16 %v628
    %v725 = vunpack.c.l.b16 %v629
    %v726 = vunpack.c.l.b16 %v630
    %v727 = vunpack.c.l.b16 %v631
    %v728 = vunpack.c.l.b16 %v632
    %v729 = vunpack.c.l.b16 %v633
    %v730 = vunpack.c.l.b16 %v634
    %v731 = vunpack.c.l.b16 %v635
    %v732 = vunpack.c.l.b16 %v636
    %v733 = vunpack.c.l.b16 %v637
    %v734 = vunpack.c.l.b16 %v638
    %v735 = vunpack.c.l.b16 %v639
    %v736 = vunpack.c.l.b16 %v640
    %v737 = vunpack.c.l.b16 %v641
    %v738 = vunpack.c.l.b16 %v642
    %v739 = vunpack.c.l.b16 %v643
    %v740 = vunpack.c.l.b16 %v644
    %v741 = vpack.c.b16 %v694, %v693
    %v742 = vpack.c.b16 %v696, %v695
    %v743 = vpack.c.b16 %v698, %v697
    %v744 = vpack.c.b16 %v700, %v699
    %v745 = vpack.c.b16 %v702, %v701
    %v746 = vpack.c.b16 %v704, %v703
    %v747 = vpack.c.b16 %v706, %v705
    %v748 = vpack.c.b16 %v708, %v707
    %v749 = vpack.c.b16 %v710, %v709
    %v750 = vpack.c.b16 %v712, %v711
    %v751 = vpack.c.b16 %v714, %v713
    %v752 = vpack.c.b16 %v716, %v715
    %v753 = vpack.c.b16 %v718, %v717
    %v754 = vpack.c.b16 %v720, %v719
    %v755 = vpack.c.b16 %v722, %v721
    %v756 = vpack.c.b16 %v724, %v723
    %v757 = vpack.c.b16 %v726, %v725
    %v758 = vpack.c.b16 %v728, %v727
    %v759 = vpack.c.b16 %v730, %v729
    %v760 = vpack.c.b16 %v732, %v731
    %v761 = vpack.c.b16 %v734, %v733
    %v762 = vpack.c.b16 %v736, %v735
    %v763 = vpack.c.b16 %v738, %v737
    %v764 = vpack.c.b16 %v740, %v739
    %789 = vmatpush.bf16.msra.mxu0 %v748
    %790 = vmatpush.bf16.msra.mxu0 %v747
    %791 = vmatpush.bf16.msra.mxu0 %v746
    %792 = vmatpush.bf16.msra.mxu0 %v745
    %793 = vmatpush.bf16.msra.mxu0 %v744
    %794 = vmatpush.bf16.msra.mxu0 %v743
    %795 = vmatpush.bf16.msra.mxu0 %v742
    %796 = vmatpush.bf16.msra.mxu0 %v741
    %797 = vmatmul.bf16.gmra.mxu0 %v594
    %v798 = vpop.f32.mrf.mxu0
    %v799 = vadd.f32 0.0, %v798
    %v800 = vpop.f32.mrf.mxu0
    %v801 = vadd.f32 0.0, %v800
    %802 = vdwg.mxu0
    %803 = vmatpush.bf16.msra.mxu0 %v756
    %804 = vmatpush.bf16.msra.mxu0 %v755
    %805 = vmatpush.bf16.msra.mxu0 %v754
    %806 = vmatpush.bf16.msra.mxu0 %v753
    %807 = vmatpush.bf16.msra.mxu0 %v752
    %808 = vmatpush.bf16.msra.mxu0 %v751
    %809 = vmatpush.bf16.msra.mxu0 %v750
    %810 = vmatpush.bf16.msra.mxu0 %v749
    %811 = vmatmul.bf16.gmra.mxu0 %v595
    %v812 = vpop.f32.mrf.mxu0
    %v813 = vadd.f32 %v799, %v812
    %v814 = vpop.f32.mrf.mxu0
    %v815 = vadd.f32 %v801, %v814
    %816 = vdwg.mxu0
    %817 = vmatpush.bf16.msra.mxu0 %v764
    %818 = vmatpush.bf16.msra.mxu0 %v763
    %819 = vmatpush.bf16.msra.mxu0 %v762
    %820 = vmatpush.bf16.msra.mxu0 %v761
    %821 = vmatpush.bf16.msra.mxu0 %v760
    %822 = vmatpush.bf16.msra.mxu0 %v759
    %823 = vmatpush.bf16.msra.mxu0 %v758
    %824 = vmatpush.bf16.msra.mxu0 %v757
    %825 = vmatmul.bf16.gmra.mxu0 %v596
    %v826 = vpop.f32.mrf.mxu0
    %v827 = vadd.f32 %v813, %v826
    %v828 = vpop.f32.mrf.mxu0
    %v829 = vadd.f32 %v815, %v828
    %830 = vdwg.mxu0
    %v831 = vpack.c.bf16 %v827, %v827
    %v832 = vpack.c.bf16 %v829, %v829
    %v833 = vunpack.c.l.bf16 %v831
    %v834 = vunpack.c.l.bf16 %v832
    %v835 = vtanh.pop %v833
    %v836 = vtanh.pop %v834
    %v837 = vpack.c.bf16 %v835, %v835
    %v838 = vpack.c.bf16 %v836, %v836
    %v839 = vunpack.c.l.bf16 %v837
    %v840 = vunpack.c.l.bf16 %v838
    %v841 = vmul.f32 %v839, 0.5
    %v842 = vmul.f32 %v840, 0.5
    %v843 = vpack.c.bf16 %v841, %v841
    %v844 = vpack.c.bf16 %v842, %v842
    %v845 = vunpack.c.l.bf16 %v843
    %v846 = vunpack.c.l.bf16 %v844
    %v847 = vadd.f32 %v845, 0.5
    %v848 = vadd.f32 %v846, 0.5
    %v849 = vpack.c.bf16 %v848, %v847
    %v850 = vld [vmem:[#allocation8] sm:$0xf]
    %v851 = vld [vmem:[#allocation8 + $0x4] sm:$0xf]
    %v852 = vld [vmem:[#allocation8 + $0x8] sm:$0xf]
    %v853 = vld [vmem:[#allocation8 + $0xc] sm:$0xf]
    %v854 = vld [vmem:[#allocation8 + $0x10] sm:$0xf]
    %v855 = vld [vmem:[#allocation8 + $0x14] sm:$0xf]
    %v856 = vld [vmem:[#allocation8 + $0x18] sm:$0xf]
    %v857 = vld [vmem:[#allocation8 + $0x1c] sm:$0xf]
    %v858 = vld [vmem:[#allocation8 + $0x20] sm:$0xf]
    %v859 = vld [vmem:[#allocation8 + $0x24] sm:$0xf]
    %v860 = vld [vmem:[#allocation8 + $0x28] sm:$0xf]
    %v861 = vld [vmem:[#allocation8 + $0x2c] sm:$0xf]
    %v862 = vld [vmem:[#allocation8 + $0x30] sm:$0xf]
    %v863 = vld [vmem:[#allocation8 + $0x34] sm:$0xf]
    %v864 = vld [vmem:[#allocation8 + $0x38] sm:$0xf]
    %v865 = vld [vmem:[#allocation8 + $0x3c] sm:$0xf]
    %v882 = vunpack.c.l.b16 %v850
    %v883 = vunpack.c.l.b16 %v851
    %v884 = vunpack.c.l.b16 %v852
    %v885 = vunpack.c.l.b16 %v853
    %v886 = vunpack.c.l.b16 %v854
    %v887 = vunpack.c.l.b16 %v855
    %v888 = vunpack.c.l.b16 %v856
    %v889 = vunpack.c.l.b16 %v857
    %v890 = vunpack.c.l.b16 %v858
    %v891 = vunpack.c.l.b16 %v859
    %v892 = vunpack.c.l.b16 %v860
    %v893 = vunpack.c.l.b16 %v861
    %v894 = vunpack.c.l.b16 %v862
    %v895 = vunpack.c.l.b16 %v863
    %v896 = vunpack.c.l.b16 %v864
    %v897 = vunpack.c.l.b16 %v865
    %v898 = vpack.c.b16 %v883, %v882
    %v899 = vpack.c.b16 %v885, %v884
    %v900 = vpack.c.b16 %v887, %v886
    %v901 = vpack.c.b16 %v889, %v888
    %v902 = vpack.c.b16 %v891, %v890
    %v903 = vpack.c.b16 %v893, %v892
    %v904 = vpack.c.b16 %v895, %v894
    %v905 = vpack.c.b16 %v897, %v896
    %914 = vmatpush.bf16.msra.mxu0 %v905
    %915 = vmatpush.bf16.msra.mxu0 %v904
    %916 = vmatpush.bf16.msra.mxu0 %v903
    %917 = vmatpush.bf16.msra.mxu0 %v902
    %918 = vmatpush.bf16.msra.mxu0 %v901
    %919 = vmatpush.bf16.msra.mxu0 %v900
    %920 = vmatpush.bf16.msra.mxu0 %v899
    %921 = vmatpush.bf16.msra.mxu0 %v898
    %922 = vmatmul.bf16.gmra.mxu0 %v849
    %v923 = vpop.f32.mrf.mxu0
    %v924 = vadd.f32 0.0, %v923
    %v925 = vpop.f32.mrf.mxu0
    %v926 = vadd.f32 0.0, %v925
    %927 = vdwg.mxu0
    %v928 = vpack.c.bf16 %v924, %v924
    %v929 = vpack.c.bf16 %v926, %v926
    %v930 = vunpack.c.l.bf16 %v928
    %v931 = vunpack.c.l.bf16 %v929
    %v932 = vtanh.pop %v930
    %v933 = vtanh.pop %v931
    %v934 = vpack.c.bf16 %v932, %v932
    %v935 = vpack.c.bf16 %v933, %v933
    %v936 = vunpack.c.l.bf16 %v934
    %v937 = vunpack.c.l.bf16 %v935
    %v938 = vmul.f32 %v936, 0.5
    %v939 = vmul.f32 %v937, 0.5
    %v940 = vpack.c.bf16 %v938, %v938
    %v941 = vpack.c.bf16 %v939, %v939
    %v942 = vunpack.c.l.bf16 %v940
    %v943 = vunpack.c.l.bf16 %v941
    %v944 = vadd.f32 %v942, 0.5
    %v945 = vadd.f32 %v943, 0.5
    %v946 = vpack.c.bf16 %v945, %v944
    %v947 = vld [vmem:[#allocation10] sm:$0xf]
    %v948 = vld [vmem:[#allocation10 + $0x4] sm:$0xf]
    %v949 = vld [vmem:[#allocation10 + $0x8] sm:$0xf]
    %v950 = vld [vmem:[#allocation10 + $0xc] sm:$0xf]
    %v951 = vld [vmem:[#allocation10 + $0x10] sm:$0xf]
    %v952 = vld [vmem:[#allocation10 + $0x14] sm:$0xf]
    %v953 = vld [vmem:[#allocation10 + $0x18] sm:$0xf]
    %v954 = vld [vmem:[#allocation10 + $0x1c] sm:$0xf]
    %v955 = vld [vmem:[#allocation10 + $0x20] sm:$0xf]
    %v956 = vld [vmem:[#allocation10 + $0x24] sm:$0xf]
    %v957 = vld [vmem:[#allocation10 + $0x28] sm:$0xf]
    %v958 = vld [vmem:[#allocation10 + $0x2c] sm:$0xf]
    %v959 = vld [vmem:[#allocation10 + $0x30] sm:$0xf]
    %v960 = vld [vmem:[#allocation10 + $0x34] sm:$0xf]
    %v961 = vld [vmem:[#allocation10 + $0x38] sm:$0xf]
    %v962 = vld [vmem:[#allocation10 + $0x3c] sm:$0xf]
    %v979 = vunpack.c.l.b16 %v947
    %v980 = vunpack.c.l.b16 %v948
    %v981 = vunpack.c.l.b16 %v949
    %v982 = vunpack.c.l.b16 %v950
    %v983 = vunpack.c.l.b16 %v951
    %v984 = vunpack.c.l.b16 %v952
    %v985 = vunpack.c.l.b16 %v953
    %v986 = vunpack.c.l.b16 %v954
    %v987 = vunpack.c.l.b16 %v955
    %v988 = vunpack.c.l.b16 %v956
    %v989 = vunpack.c.l.b16 %v957
    %v990 = vunpack.c.l.b16 %v958
    %v991 = vunpack.c.l.b16 %v959
    %v992 = vunpack.c.l.b16 %v960
    %v993 = vunpack.c.l.b16 %v961
    %v994 = vunpack.c.l.b16 %v962
    %v995 = vpack.c.b16 %v980, %v979
    %v996 = vpack.c.b16 %v982, %v981
    %v997 = vpack.c.b16 %v984, %v983
    %v998 = vpack.c.b16 %v986, %v985
    %v999 = vpack.c.b16 %v988, %v987
    %v1000 = vpack.c.b16 %v990, %v989
    %v1001 = vpack.c.b16 %v992, %v991
    %v1002 = vpack.c.b16 %v994, %v993
    %1011 = vmatpush.bf16.msra.mxu0 %v1002
    %1012 = vmatpush.bf16.msra.mxu0 %v1001
    %1013 = vmatpush.bf16.msra.mxu0 %v1000
    %1014 = vmatpush.bf16.msra.mxu0 %v999
    %1015 = vmatpush.bf16.msra.mxu0 %v998
    %1016 = vmatpush.bf16.msra.mxu0 %v997
    %1017 = vmatpush.bf16.msra.mxu0 %v996
    %1018 = vmatpush.bf16.msra.mxu0 %v995
    %1019 = vmatmul.bf16.gmra.mxu0 %v946
    %v1020 = vpop.f32.mrf.mxu0
    %v1021 = vadd.f32 0.0, %v1020
    %v1022 = vpop.f32.mrf.mxu0
    %v1023 = vadd.f32 0.0, %v1022
    %1024 = vdwg.mxu0
    %v1025 = vpack.c.bf16 %v1021, %v1021
    %v1026 = vpack.c.bf16 %v1023, %v1023
    %v1027 = vunpack.c.l.bf16 %v1025
    %v1028 = vunpack.c.l.bf16 %v1026
    %v1029 = vtanh.pop %v1027
    %v1030 = vtanh.pop %v1028
    %v1031 = vpack.c.bf16 %v1029, %v1029
    %v1032 = vpack.c.bf16 %v1030, %v1030
    %v1033 = vunpack.c.l.bf16 %v1031
    %v1034 = vunpack.c.l.bf16 %v1032
    %v1035 = vmul.f32 %v1033, 0.5
    %v1036 = vmul.f32 %v1034, 0.5
    %v1037 = vpack.c.bf16 %v1035, %v1035
    %v1038 = vpack.c.bf16 %v1036, %v1036
    %v1039 = vunpack.c.l.bf16 %v1037
    %v1040 = vunpack.c.l.bf16 %v1038
    %v1041 = vadd.f32 %v1039, 0.5
    %v1042 = vadd.f32 %v1040, 0.5
    %v1043 = vpack.c.bf16 %v1042, %v1041
    %v1044 = vld [vmem:[#allocation11] sm:$0xff]
    %v1045 = vld [vmem:[#allocation11 + $0x8] sm:$0xf]
    %v1046 = vld [vmem:[#allocation11 + $0xc] sm:$0xff]
    %v1047 = vld [vmem:[#allocation11 + $0x14] sm:$0xf]
    %v1048 = vld [vmem:[#allocation11 + $0x18] sm:$0xff]
    %v1049 = vld [vmem:[#allocation11 + $0x20] sm:$0xf]
    %v1050 = vld [vmem:[#allocation11 + $0x24] sm:$0xff]
    %v1051 = vld [vmem:[#allocation11 + $0x2c] sm:$0xf]
    %v1052 = vld [vmem:[#allocation11 + $0x30] sm:$0xff]
    %v1053 = vld [vmem:[#allocation11 + $0x38] sm:$0xf]
    %v1054 = vld [vmem:[#allocation11 + $0x3c] sm:$0xff]
    %v1055 = vld [vmem:[#allocation11 + $0x44] sm:$0xf]
    %v1056 = vld [vmem:[#allocation11 + $0x48] sm:$0xff]
    %v1057 = vld [vmem:[#allocation11 + $0x50] sm:$0xf]
    %v1058 = vld [vmem:[#allocation11 + $0x54] sm:$0xff]
    %v1059 = vld [vmem:[#allocation11 + $0x5c] sm:$0xf]
    %v1060 = vld [vmem:[#allocation11 + $0x60] sm:$0xff]
    %v1061 = vld [vmem:[#allocation11 + $0x68] sm:$0xf]
    %v1062 = vld [vmem:[#allocation11 + $0x6c] sm:$0xff]
    %v1063 = vld [vmem:[#allocation11 + $0x74] sm:$0xf]
    %v1064 = vld [vmem:[#allocation11 + $0x78] sm:$0xff]
    %v1065 = vld [vmem:[#allocation11 + $0x80] sm:$0xf]
    %v1066 = vld [vmem:[#allocation11 + $0x84] sm:$0xff]
    %v1067 = vld [vmem:[#allocation11 + $0x8c] sm:$0xf]
    %v1068 = vld [vmem:[#allocation11 + $0x90] sm:$0xff]
    %v1069 = vld [vmem:[#allocation11 + $0x98] sm:$0xf]
    %v1070 = vld [vmem:[#allocation11 + $0x9c] sm:$0xff]
    %v1071 = vld [vmem:[#allocation11 + $0xa4] sm:$0xf]
    %v1072 = vld [vmem:[#allocation11 + $0xa8] sm:$0xff]
    %v1073 = vld [vmem:[#allocation11 + $0xb0] sm:$0xf]
    %v1074 = vld [vmem:[#allocation11 + $0xb4] sm:$0xff]
    %v1075 = vld [vmem:[#allocation11 + $0xbc] sm:$0xf]
    %v1108 = vunpack.c.l.b16 %v1044
    %v1109 = vunpack.c.h.b16 %v1044
    %v1110 = vunpack.c.l.b16 %v1045
    %v1111 = vunpack.c.l.b16 %v1046
    %v1112 = vunpack.c.h.b16 %v1046
    %v1113 = vunpack.c.l.b16 %v1047
    %v1114 = vunpack.c.l.b16 %v1048
    %v1115 = vunpack.c.h.b16 %v1048
    %v1116 = vunpack.c.l.b16 %v1049
    %v1117 = vunpack.c.l.b16 %v1050
    %v1118 = vunpack.c.h.b16 %v1050
    %v1119 = vunpack.c.l.b16 %v1051
    %v1120 = vunpack.c.l.b16 %v1052
    %v1121 = vunpack.c.h.b16 %v1052
    %v1122 = vunpack.c.l.b16 %v1053
    %v1123 = vunpack.c.l.b16 %v1054
    %v1124 = vunpack.c.h.b16 %v1054
    %v1125 = vunpack.c.l.b16 %v1055
    %v1126 = vunpack.c.l.b16 %v1056
    %v1127 = vunpack.c.h.b16 %v1056
    %v1128 = vunpack.c.l.b16 %v1057
    %v1129 = vunpack.c.l.b16 %v1058
    %v1130 = vunpack.c.h.b16 %v1058
    %v1131 = vunpack.c.l.b16 %v1059
    %v1132 = vunpack.c.l.b16 %v1060
    %v1133 = vunpack.c.h.b16 %v1060
    %v1134 = vunpack.c.l.b16 %v1061
    %v1135 = vunpack.c.l.b16 %v1062
    %v1136 = vunpack.c.h.b16 %v1062
    %v1137 = vunpack.c.l.b16 %v1063
    %v1138 = vunpack.c.l.b16 %v1064
    %v1139 = vunpack.c.h.b16 %v1064
    %v1140 = vunpack.c.l.b16 %v1065
    %v1141 = vunpack.c.l.b16 %v1066
    %v1142 = vunpack.c.h.b16 %v1066
    %v1143 = vunpack.c.l.b16 %v1067
    %v1144 = vunpack.c.l.b16 %v1068
    %v1145 = vunpack.c.h.b16 %v1068
    %v1146 = vunpack.c.l.b16 %v1069
    %v1147 = vunpack.c.l.b16 %v1070
    %v1148 = vunpack.c.h.b16 %v1070
    %v1149 = vunpack.c.l.b16 %v1071
    %v1150 = vunpack.c.l.b16 %v1072
    %v1151 = vunpack.c.h.b16 %v1072
    %v1152 = vunpack.c.l.b16 %v1073
    %v1153 = vunpack.c.l.b16 %v1074
    %v1154 = vunpack.c.h.b16 %v1074
    %v1155 = vunpack.c.l.b16 %v1075
    %v1156 = vpack.c.b16 %v1111, %v1108
    %v1157 = vpack.c.b16 %v1112, %v1109
    %v1158 = vpack.c.b16 %v1113, %v1110
    %v1159 = vpack.c.b16 %v1117, %v1114
    %v1160 = vpack.c.b16 %v1118, %v1115
    %v1161 = vpack.c.b16 %v1119, %v1116
    %v1162 = vpack.c.b16 %v1123, %v1120
    %v1163 = vpack.c.b16 %v1124, %v1121
    %v1164 = vpack.c.b16 %v1125, %v1122
    %v1165 = vpack.c.b16 %v1129, %v1126
    %v1166 = vpack.c.b16 %v1130, %v1127
    %v1167 = vpack.c.b16 %v1131, %v1128
    %v1168 = vpack.c.b16 %v1135, %v1132
    %v1169 = vpack.c.b16 %v1136, %v1133
    %v1170 = vpack.c.b16 %v1137, %v1134
    %v1171 = vpack.c.b16 %v1141, %v1138
    %v1172 = vpack.c.b16 %v1142, %v1139
    %v1173 = vpack.c.b16 %v1143, %v1140
    %v1174 = vpack.c.b16 %v1147, %v1144
    %v1175 = vpack.c.b16 %v1148, %v1145
    %v1176 = vpack.c.b16 %v1149, %v1146
    %v1177 = vpack.c.b16 %v1153, %v1150
    %v1178 = vpack.c.b16 %v1154, %v1151
    %v1179 = vpack.c.b16 %v1155, %v1152
    %1204 = vmatpush.bf16.msra.mxu0 %v1177
    %1205 = vmatpush.bf16.msra.mxu0 %v1174
    %1206 = vmatpush.bf16.msra.mxu0 %v1171
    %1207 = vmatpush.bf16.msra.mxu0 %v1168
    %1208 = vmatpush.bf16.msra.mxu0 %v1165
    %1209 = vmatpush.bf16.msra.mxu0 %v1162
    %1210 = vmatpush.bf16.msra.mxu0 %v1159
    %1211 = vmatpush.bf16.msra.mxu0 %v1156
    %1212 = vmatmul.bf16.gmra.mxu0 %v1043
    %v1213 = vpop.f32.mrf.mxu0
    %v1214 = vadd.f32 0.0, %v1213
    %v1215 = vpop.f32.mrf.mxu0
    %v1216 = vadd.f32 0.0, %v1215
    %1217 = vdwg.mxu0
    %1218 = vmatpush.bf16.msra.mxu0 %v1178
    %1219 = vmatpush.bf16.msra.mxu0 %v1175
    %1220 = vmatpush.bf16.msra.mxu0 %v1172
    %1221 = vmatpush.bf16.msra.mxu0 %v1169
    %1222 = vmatpush.bf16.msra.mxu0 %v1166
    %1223 = vmatpush.bf16.msra.mxu0 %v1163
    %1224 = vmatpush.bf16.msra.mxu0 %v1160
    %1225 = vmatpush.bf16.msra.mxu0 %v1157
    %1226 = vmatmul.bf16.gmra.mxu0 %v1043
    %v1227 = vpop.f32.mrf.mxu0
    %v1228 = vadd.f32 0.0, %v1227
    %v1229 = vpop.f32.mrf.mxu0
    %v1230 = vadd.f32 0.0, %v1229
    %1231 = vdwg.mxu0
    %1232 = vmatpush.bf16.msra.mxu0 %v1179
    %1233 = vmatpush.bf16.msra.mxu0 %v1176
    %1234 = vmatpush.bf16.msra.mxu0 %v1173
    %1235 = vmatpush.bf16.msra.mxu0 %v1170
    %1236 = vmatpush.bf16.msra.mxu0 %v1167
    %1237 = vmatpush.bf16.msra.mxu0 %v1164
    %1238 = vmatpush.bf16.msra.mxu0 %v1161
    %1239 = vmatpush.bf16.msra.mxu0 %v1158
    %1240 = vmatmul.bf16.gmra.mxu0 %v1043
    %v1241 = vpop.f32.mrf.mxu0
    %v1242 = vadd.f32 0.0, %v1241
    %v1243 = vpop.f32.mrf.mxu0
    %v1244 = vadd.f32 0.0, %v1243
    %1245 = vdwg.mxu0
    %v1246 = vpack.c.bf16 %v1228, %v1214
    %v1247 = vpack.c.bf16 %v1242, %v1242
    %v1248 = vpack.c.bf16 %v1230, %v1216
    %v1249 = vpack.c.bf16 %v1244, %v1244
    %v1250 = vunpack.c.l.bf16 %v1246
    %v1251 = vunpack.c.h.bf16 %v1246
    %v1252 = vunpack.c.l.bf16 %v1247
    %v1253 = vunpack.c.l.bf16 %v1248
    %v1254 = vunpack.c.h.bf16 %v1248
    %v1255 = vunpack.c.l.bf16 %v1249
    %v1256 = vtanh.pop %v1250
    %v1257 = vtanh.pop %v1251
    %v1258 = vtanh.pop %v1252
    %v1259 = vtanh.pop %v1253
    %v1260 = vtanh.pop %v1254
    %v1261 = vtanh.pop %v1255
    %v1262 = vpack.c.bf16 %v1257, %v1256
    %v1263 = vpack.c.bf16 %v1258, %v1258
    %v1264 = vpack.c.bf16 %v1260, %v1259
    %v1265 = vpack.c.bf16 %v1261, %v1261
    %v1266 = vunpack.c.l.bf16 %v1262
    %v1267 = vunpack.c.h.bf16 %v1262
    %v1268 = vunpack.c.l.bf16 %v1263
    %v1269 = vunpack.c.l.bf16 %v1264
    %v1270 = vunpack.c.h.bf16 %v1264
    %v1271 = vunpack.c.l.bf16 %v1265
    %v1272 = vmul.f32 %v1266, 0.5
    %v1273 = vmul.f32 %v1267, 0.5
    %v1274 = vmul.f32 %v1268, 0.5
    %v1275 = vmul.f32 %v1269, 0.5
    %v1276 = vmul.f32 %v1270, 0.5
    %v1277 = vmul.f32 %v1271, 0.5
    %v1278 = vpack.c.bf16 %v1273, %v1272
    %v1279 = vpack.c.bf16 %v1274, %v1274
    %v1280 = vpack.c.bf16 %v1276, %v1275
    %v1281 = vpack.c.bf16 %v1277, %v1277
    %v1282 = vunpack.c.l.bf16 %v1278
    %v1283 = vunpack.c.h.bf16 %v1278
    %v1284 = vunpack.c.l.bf16 %v1279
    %v1285 = vunpack.c.l.bf16 %v1280
    %v1286 = vunpack.c.h.bf16 %v1280
    %v1287 = vunpack.c.l.bf16 %v1281
    %v1288 = vadd.f32 %v1282, 0.5
    %v1289 = vadd.f32 %v1283, 0.5
    %v1290 = vadd.f32 %v1284, 0.5
    %v1291 = vadd.f32 %v1285, 0.5
    %v1292 = vadd.f32 %v1286, 0.5
    %v1293 = vadd.f32 %v1287, 0.5
    %v1294 = vpack.c.bf16 %v1291, %v1288
    %v1295 = vpack.c.bf16 %v1292, %v1289
    %v1296 = vpack.c.bf16 %v1293, %v1290
    %v1297 = vld [vmem:[#allocation13] sm:$0xff]
    %v1298 = vld [vmem:[#allocation13 + $0x8] sm:$0xff]
    %v1299 = vld [vmem:[#allocation13 + $0x10] sm:$0xff]
    %v1300 = vld [vmem:[#allocation13 + $0x18] sm:$0xff]
    %v1301 = vld [vmem:[#allocation13 + $0x20] sm:$0xff]
    %v1302 = vld [vmem:[#allocation13 + $0x28] sm:$0xff]
    %v1303 = vld [vmem:[#allocation13 + $0x30] sm:$0xff]
    %v1304 = vld [vmem:[#allocation13 + $0x38] sm:$0xff]
    %v1305 = vld [vmem:[#allocation13 + $0x40] sm:$0xff]
    %v1306 = vld [vmem:[#allocation13 + $0x48] sm:$0xff]
    %v1307 = vld [vmem:[#allocation13 + $0x50] sm:$0xff]
    %v1308 = vld [vmem:[#allocation13 + $0x58] sm:$0xff]
    %v1309 = vld [vmem:[#allocation13 + $0x60] sm:$0xff]
    %v1310 = vld [vmem:[#allocation13 + $0x68] sm:$0xff]
    %v1311 = vld [vmem:[#allocation13 + $0x70] sm:$0xff]
    %v1312 = vld [vmem:[#allocation13 + $0x78] sm:$0xff]
    %v1313 = vld [vmem:[#allocation13 + $0x80] sm:$0xff]
    %v1314 = vld [vmem:[#allocation13 + $0x88] sm:$0xff]
    %v1315 = vld [vmem:[#allocation13 + $0x90] sm:$0xff]
    %v1316 = vld [vmem:[#allocation13 + $0x98] sm:$0xff]
    %v1317 = vld [vmem:[#allocation13 + $0xa0] sm:$0xff]
    %v1318 = vld [vmem:[#allocation13 + $0xa8] sm:$0xff]
    %v1319 = vld [vmem:[#allocation13 + $0xb0] sm:$0xff]
    %v1320 = vld [vmem:[#allocation13 + $0xb8] sm:$0xff]
    %v1321 = vld [vmem:[#allocation13 + $0xc0] sm:$0xff]
    %v1322 = vld [vmem:[#allocation13 + $0xc8] sm:$0xff]
    %v1323 = vld [vmem:[#allocation13 + $0xd0] sm:$0xff]
    %v1324 = vld [vmem:[#allocation13 + $0xd8] sm:$0xff]
    %v1325 = vld [vmem:[#allocation13 + $0xe0] sm:$0xff]
    %v1326 = vld [vmem:[#allocation13 + $0xe8] sm:$0xff]
    %v1327 = vld [vmem:[#allocation13 + $0xf0] sm:$0xff]
    %v1328 = vld [vmem:[#allocation13 + $0xf8] sm:$0xff]
    %v1329 = vld [vmem:[#allocation13 + $0x100] sm:$0xff]
    %v1330 = vld [vmem:[#allocation13 + $0x108] sm:$0xff]
    %v1331 = vld [vmem:[#allocation13 + $0x110] sm:$0xff]
    %v1332 = vld [vmem:[#allocation13 + $0x118] sm:$0xff]
    %v1333 = vld [vmem:[#allocation13 + $0x120] sm:$0xff]
    %v1334 = vld [vmem:[#allocation13 + $0x128] sm:$0xff]
    %v1335 = vld [vmem:[#allocation13 + $0x130] sm:$0xff]
    %v1336 = vld [vmem:[#allocation13 + $0x138] sm:$0xff]
    %v1337 = vld [vmem:[#allocation13 + $0x140] sm:$0xff]
    %v1338 = vld [vmem:[#allocation13 + $0x148] sm:$0xff]
    %v1339 = vld [vmem:[#allocation13 + $0x150] sm:$0xff]
    %v1340 = vld [vmem:[#allocation13 + $0x158] sm:$0xff]
    %v1341 = vld [vmem:[#allocation13 + $0x160] sm:$0xff]
    %v1342 = vld [vmem:[#allocation13 + $0x168] sm:$0xff]
    %v1343 = vld [vmem:[#allocation13 + $0x170] sm:$0xff]
    %v1344 = vld [vmem:[#allocation13 + $0x178] sm:$0xff]
    %v1393 = vunpack.c.l.b16 %v1297
    %v1394 = vunpack.c.h.b16 %v1297
    %v1395 = vunpack.c.l.b16 %v1298
    %v1396 = vunpack.c.h.b16 %v1298
    %v1397 = vunpack.c.l.b16 %v1299
    %v1398 = vunpack.c.h.b16 %v1299
    %v1399 = vunpack.c.l.b16 %v1300
    %v1400 = vunpack.c.h.b16 %v1300
    %v1401 = vunpack.c.l.b16 %v1301
    %v1402 = vunpack.c.h.b16 %v1301
    %v1403 = vunpack.c.l.b16 %v1302
    %v1404 = vunpack.c.h.b16 %v1302
    %v1405 = vunpack.c.l.b16 %v1303
    %v1406 = vunpack.c.h.b16 %v1303
    %v1407 = vunpack.c.l.b16 %v1304
    %v1408 = vunpack.c.h.b16 %v1304
    %v1409 = vunpack.c.l.b16 %v1305
    %v1410 = vunpack.c.h.b16 %v1305
    %v1411 = vunpack.c.l.b16 %v1306
    %v1412 = vunpack.c.h.b16 %v1306
    %v1413 = vunpack.c.l.b16 %v1307
    %v1414 = vunpack.c.h.b16 %v1307
    %v1415 = vunpack.c.l.b16 %v1308
    %v1416 = vunpack.c.h.b16 %v1308
    %v1417 = vunpack.c.l.b16 %v1309
    %v1418 = vunpack.c.h.b16 %v1309
    %v1419 = vunpack.c.l.b16 %v1310
    %v1420 = vunpack.c.h.b16 %v1310
    %v1421 = vunpack.c.l.b16 %v1311
    %v1422 = vunpack.c.h.b16 %v1311
    %v1423 = vunpack.c.l.b16 %v1312
    %v1424 = vunpack.c.h.b16 %v1312
    %v1425 = vunpack.c.l.b16 %v1313
    %v1426 = vunpack.c.h.b16 %v1313
    %v1427 = vunpack.c.l.b16 %v1314
    %v1428 = vunpack.c.h.b16 %v1314
    %v1429 = vunpack.c.l.b16 %v1315
    %v1430 = vunpack.c.h.b16 %v1315
    %v1431 = vunpack.c.l.b16 %v1316
    %v1432 = vunpack.c.h.b16 %v1316
    %v1433 = vunpack.c.l.b16 %v1317
    %v1434 = vunpack.c.h.b16 %v1317
    %v1435 = vunpack.c.l.b16 %v1318
    %v1436 = vunpack.c.h.b16 %v1318
    %v1437 = vunpack.c.l.b16 %v1319
    %v1438 = vunpack.c.h.b16 %v1319
    %v1439 = vunpack.c.l.b16 %v1320
    %v1440 = vunpack.c.h.b16 %v1320
    %v1441 = vunpack.c.l.b16 %v1321
    %v1442 = vunpack.c.h.b16 %v1321
    %v1443 = vunpack.c.l.b16 %v1322
    %v1444 = vunpack.c.h.b16 %v1322
    %v1445 = vunpack.c.l.b16 %v1323
    %v1446 = vunpack.c.h.b16 %v1323
    %v1447 = vunpack.c.l.b16 %v1324
    %v1448 = vunpack.c.h.b16 %v1324
    %v1449 = vunpack.c.l.b16 %v1325
    %v1450 = vunpack.c.h.b16 %v1325
    %v1451 = vunpack.c.l.b16 %v1326
    %v1452 = vunpack.c.h.b16 %v1326
    %v1453 = vunpack.c.l.b16 %v1327
    %v1454 = vunpack.c.h.b16 %v1327
    %v1455 = vunpack.c.l.b16 %v1328
    %v1456 = vunpack.c.h.b16 %v1328
    %v1457 = vunpack.c.l.b16 %v1329
    %v1458 = vunpack.c.h.b16 %v1329
    %v1459 = vunpack.c.l.b16 %v1330
    %v1460 = vunpack.c.h.b16 %v1330
    %v1461 = vunpack.c.l.b16 %v1331
    %v1462 = vunpack.c.h.b16 %v1331
    %v1463 = vunpack.c.l.b16 %v1332
    %v1464 = vunpack.c.h.b16 %v1332
    %v1465 = vunpack.c.l.b16 %v1333
    %v1466 = vunpack.c.h.b16 %v1333
    %v1467 = vunpack.c.l.b16 %v1334
    %v1468 = vunpack.c.h.b16 %v1334
    %v1469 = vunpack.c.l.b16 %v1335
    %v1470 = vunpack.c.h.b16 %v1335
    %v1471 = vunpack.c.l.b16 %v1336
    %v1472 = vunpack.c.h.b16 %v1336
    %v1473 = vunpack.c.l.b16 %v1337
    %v1474 = vunpack.c.h.b16 %v1337
    %v1475 = vunpack.c.l.b16 %v1338
    %v1476 = vunpack.c.h.b16 %v1338
    %v1477 = vunpack.c.l.b16 %v1339
    %v1478 = vunpack.c.h.b16 %v1339
    %v1479 = vunpack.c.l.b16 %v1340
    %v1480 = vunpack.c.h.b16 %v1340
    %v1481 = vunpack.c.l.b16 %v1341
    %v1482 = vunpack.c.h.b16 %v1341
    %v1483 = vunpack.c.l.b16 %v1342
    %v1484 = vunpack.c.h.b16 %v1342
    %v1485 = vunpack.c.l.b16 %v1343
    %v1486 = vunpack.c.h.b16 %v1343
    %v1487 = vunpack.c.l.b16 %v1344
    %v1488 = vunpack.c.h.b16 %v1344
    %v1489 = vpack.c.b16 %v1395, %v1393
    %v1490 = vpack.c.b16 %v1396, %v1394
    %v1491 = vpack.c.b16 %v1399, %v1397
    %v1492 = vpack.c.b16 %v1400, %v1398
    %v1493 = vpack.c.b16 %v1403, %v1401
    %v1494 = vpack.c.b16 %v1404, %v1402
    %v1495 = vpack.c.b16 %v1407, %v1405
    %v1496 = vpack.c.b16 %v1408, %v1406
    %v1497 = vpack.c.b16 %v1411, %v1409
    %v1498 = vpack.c.b16 %v1412, %v1410
    %v1499 = vpack.c.b16 %v1415, %v1413
    %v1500 = vpack.c.b16 %v1416, %v1414
    %v1501 = vpack.c.b16 %v1419, %v1417
    %v1502 = vpack.c.b16 %v1420, %v1418
    %v1503 = vpack.c.b16 %v1423, %v1421
    %v1504 = vpack.c.b16 %v1424, %v1422
    %v1505 = vpack.c.b16 %v1427, %v1425
    %v1506 = vpack.c.b16 %v1428, %v1426
    %v1507 = vpack.c.b16 %v1431, %v1429
    %v1508 = vpack.c.b16 %v1432, %v1430
    %v1509 = vpack.c.b16 %v1435, %v1433
    %v1510 = vpack.c.b16 %v1436, %v1434
    %v1511 = vpack.c.b16 %v1439, %v1437
    %v1512 = vpack.c.b16 %v1440, %v1438
    %v1513 = vpack.c.b16 %v1443, %v1441
    %v1514 = vpack.c.b16 %v1444, %v1442
    %v1515 = vpack.c.b16 %v1447, %v1445
    %v1516 = vpack.c.b16 %v1448, %v1446
    %v1517 = vpack.c.b16 %v1451, %v1449
    %v1518 = vpack.c.b16 %v1452, %v1450
    %v1519 = vpack.c.b16 %v1455, %v1453
    %v1520 = vpack.c.b16 %v1456, %v1454
    %v1521 = vpack.c.b16 %v1459, %v1457
    %v1522 = vpack.c.b16 %v1460, %v1458
    %v1523 = vpack.c.b16 %v1463, %v1461
    %v1524 = vpack.c.b16 %v1464, %v1462
    %v1525 = vpack.c.b16 %v1467, %v1465
    %v1526 = vpack.c.b16 %v1468, %v1466
    %v1527 = vpack.c.b16 %v1471, %v1469
    %v1528 = vpack.c.b16 %v1472, %v1470
    %v1529 = vpack.c.b16 %v1475, %v1473
    %v1530 = vpack.c.b16 %v1476, %v1474
    %v1531 = vpack.c.b16 %v1479, %v1477
    %v1532 = vpack.c.b16 %v1480, %v1478
    %v1533 = vpack.c.b16 %v1483, %v1481
    %v1534 = vpack.c.b16 %v1484, %v1482
    %v1535 = vpack.c.b16 %v1487, %v1485
    %v1536 = vpack.c.b16 %v1488, %v1486
    %1585 = vmatpush.bf16.msra.mxu0 %v1503
    %1586 = vmatpush.bf16.msra.mxu0 %v1501
    %1587 = vmatpush.bf16.msra.mxu0 %v1499
    %1588 = vmatpush.bf16.msra.mxu0 %v1497
    %1589 = vmatpush.bf16.msra.mxu0 %v1495
    %1590 = vmatpush.bf16.msra.mxu0 %v1493
    %1591 = vmatpush.bf16.msra.mxu0 %v1491
    %1592 = vmatpush.bf16.msra.mxu0 %v1489
    %1593 = vmatmul.bf16.gmra.mxu0 %v1294
    %v1594 = vpop.f32.mrf.mxu0
    %v1595 = vadd.f32 0.0, %v1594
    %v1596 = vpop.f32.mrf.mxu0
    %v1597 = vadd.f32 0.0, %v1596
    %1598 = vdwg.mxu0
    %1599 = vmatpush.bf16.msra.mxu0 %v1519
    %1600 = vmatpush.bf16.msra.mxu0 %v1517
    %1601 = vmatpush.bf16.msra.mxu0 %v1515
    %1602 = vmatpush.bf16.msra.mxu0 %v1513
    %1603 = vmatpush.bf16.msra.mxu0 %v1511
    %1604 = vmatpush.bf16.msra.mxu0 %v1509
    %1605 = vmatpush.bf16.msra.mxu0 %v1507
    %1606 = vmatpush.bf16.msra.mxu0 %v1505
    %1607 = vmatmul.bf16.gmra.mxu0 %v1295
    %v1608 = vpop.f32.mrf.mxu0
    %v1609 = vadd.f32 %v1595, %v1608
    %v1610 = vpop.f32.mrf.mxu0
    %v1611 = vadd.f32 %v1597, %v1610
    %1612 = vdwg.mxu0
    %1613 = vmatpush.bf16.msra.mxu0 %v1535
    %1614 = vmatpush.bf16.msra.mxu0 %v1533
    %1615 = vmatpush.bf16.msra.mxu0 %v1531
    %1616 = vmatpush.bf16.msra.mxu0 %v1529
    %1617 = vmatpush.bf16.msra.mxu0 %v1527
    %1618 = vmatpush.bf16.msra.mxu0 %v1525
    %1619 = vmatpush.bf16.msra.mxu0 %v1523
    %1620 = vmatpush.bf16.msra.mxu0 %v1521
    %1621 = vmatmul.bf16.gmra.mxu0 %v1296
    %v1622 = vpop.f32.mrf.mxu0
    %v1623 = vadd.f32 %v1609, %v1622
    %v1624 = vpop.f32.mrf.mxu0
    %v1625 = vadd.f32 %v1611, %v1624
    %1626 = vdwg.mxu0
    %1627 = vmatpush.bf16.msra.mxu0 %v1504
    %1628 = vmatpush.bf16.msra.mxu0 %v1502
    %1629 = vmatpush.bf16.msra.mxu0 %v1500
    %1630 = vmatpush.bf16.msra.mxu0 %v1498
    %1631 = vmatpush.bf16.msra.mxu0 %v1496
    %1632 = vmatpush.bf16.msra.mxu0 %v1494
    %1633 = vmatpush.bf16.msra.mxu0 %v1492
    %1634 = vmatpush.bf16.msra.mxu0 %v1490
    %1635 = vmatmul.bf16.gmra.mxu0 %v1294
    %v1636 = vpop.f32.mrf.mxu0
    %v1637 = vadd.f32 0.0, %v1636
    %v1638 = vpop.f32.mrf.mxu0
    %v1639 = vadd.f32 0.0, %v1638
    %1640 = vdwg.mxu0
    %1641 = vmatpush.bf16.msra.mxu0 %v1520
    %1642 = vmatpush.bf16.msra.mxu0 %v1518
    %1643 = vmatpush.bf16.msra.mxu0 %v1516
    %1644 = vmatpush.bf16.msra.mxu0 %v1514
    %1645 = vmatpush.bf16.msra.mxu0 %v1512
    %1646 = vmatpush.bf16.msra.mxu0 %v1510
    %1647 = vmatpush.bf16.msra.mxu0 %v1508
    %1648 = vmatpush.bf16.msra.mxu0 %v1506
    %1649 = vmatmul.bf16.gmra.mxu0 %v1295
    %v1650 = vpop.f32.mrf.mxu0
    %v1651 = vadd.f32 %v1637, %v1650
    %v1652 = vpop.f32.mrf.mxu0
    %v1653 = vadd.f32 %v1639, %v1652
    %1654 = vdwg.mxu0
    %1655 = vmatpush.bf16.msra.mxu0 %v1536
    %1656 = vmatpush.bf16.msra.mxu0 %v1534
    %1657 = vmatpush.bf16.msra.mxu0 %v1532
    %1658 = vmatpush.bf16.msra.mxu0 %v1530
    %1659 = vmatpush.bf16.msra.mxu0 %v1528
    %1660 = vmatpush.bf16.msra.mxu0 %v1526
    %1661 = vmatpush.bf16.msra.mxu0 %v1524
    %1662 = vmatpush.bf16.msra.mxu0 %v1522
    %1663 = vmatmul.bf16.gmra.mxu0 %v1296
    %v1664 = vpop.f32.mrf.mxu0
    %v1665 = vadd.f32 %v1651, %v1664
    %v1666 = vpop.f32.mrf.mxu0
    %v1667 = vadd.f32 %v1653, %v1666
    %1668 = vdwg.mxu0
    %1669 = vst [vmem:[#allocation14] sm:$0xff] %v1623
    %1670 = vst [vmem:[#allocation14 + $0x8] sm:$0xff] %v1665
    %1671 = vst [vmem:[#allocation14 + $0x10] sm:$0xff] %v1625
    %1672 = vst [vmem:[#allocation14 + $0x18] sm:$0xff] %v1667
    // Predicated region
    $region58: #{tpu_custom_call.1} parent=1 // pred_check
      _
    $region59: #{tpu_custom_call.1} parent=1 // pred_check_branch
      %1674 = sbr.rel (0) target = $region61
    $region60: #{tpu_custom_call.1} parent=1 // pred_region
      %1676 = vsyncadd [#allocation4], 0
      %s1677 = sshll.u32 [#allocation14], 4
      %s1678 = int_to_ptr.vmem [resolvable:$true] %s1677
      %s1679 = sshll.u32 %s7, 4
      %s1680 = int_to_ptr.hbm [resolvable:$true] %s1679
      %1685 = dma.vmem_to_hbm [thread:$0]  %s1678, 512, %s1680, [#allocation4], 256, 256, 16
    $region61: #{tpu_custom_call.1} parent=1 // pred_fallthru
      _
    // Predicated region
    $region62: #{tpu_custom_call.1} parent=1 // pred_check
      _
    $region63: #{tpu_custom_call.1} parent=1 // pred_check_branch
      %1687 = sbr.rel (0) target = $region65
    $region64: #{tpu_custom_call.1} parent=1 // pred_region
      %1689 = dma.done [#allocation4], 512
    $region65: #{tpu_custom_call.1} parent=1 // pred_fallthru
      _
    %1690 = vsyncpa [#allocation3], 1
    %1691 = vsyncpa [#allocation6], 1
    %1692 = vsyncpa [#allocation9], 1
    %1693 = vsyncpa [#allocation12], 1
    %1694 = vsyncpa [#allocation4], 1

</llo_original>
